<compile_context>
chip_gen: v7x
topology: tpu7x:2x2x1
jax: 0.10.0
libtpu: 0.0.40
codegen_flags: <defaults>
</compile_context>

<pallas_src>
import jax
import jax.numpy as jnp
from jax import lax
from jax.experimental import pallas as pl
from jax.experimental.pallas import tpu as pltpu


def _gru_chunk_kernel(gi_ref, whh_ref, bhn_ref, out_ref, h_ref):
    """One (direction, time-chunk) grid step of the bidirectional GRU.

    gi_ref  : (Tc, B, 3H)  precomputed x@W_ih^T + b_ih + [b_hr, b_hz, 0]
    whh_ref : (H, 3H)      W_hh transposed (gate order r, z, n)
    bhn_ref : (1, H)       b_hh for the n gate (stays inside r*(...))
    out_ref : (Tc, B, H)   per-timestep hidden states, forward-time order
    h_ref   : (B, H)       VMEM scratch carrying h across time chunks (f32)
    """
    Tc, B, _ = gi_ref.shape
    H = h_ref.shape[1]
    d = pl.program_id(0)          # 0 = forward direction, 1 = backward

    @pl.when(pl.program_id(1) == 0)
    def _():
        # h_0 = 0 at the start of each direction
        h_ref[...] = jnp.zeros_like(h_ref)

    whh = whh_ref[...]
    bhn = bhn_ref[...]

    def step(j, carry):
        # forward walks rows 0..Tc-1, backward walks Tc-1..0; the index_map
        # already picked the right forward-time chunk for this direction, so
        # writing at `tt` leaves the output in forward-time order.
        tt = j + d * (Tc - 1 - 2 * j)
        gi = gi_ref[tt]                                       # (B, 3H)
        h_prev = h_ref[...]                                   # (B, H) f32
        gh = jnp.dot(h_prev.astype(whh.dtype), whh,
                     preferred_element_type=jnp.float32)      # (B, 3H)
        r = jax.nn.sigmoid(gi[:, 0:H] + gh[:, 0:H])
        z = jax.nn.sigmoid(gi[:, H:2 * H] + gh[:, H:2 * H])
        n = jnp.tanh(gi[:, 2 * H:] + r * (gh[:, 2 * H:] + bhn))
        h_new = n + z * (h_prev - n)                          # == (1-z)*n + z*h
        h_ref[...] = h_new
        out_ref[tt] = h_new.astype(out_ref.dtype)
        return carry

    # Modest unrolling gives the LLO scheduler cross-iteration visibility.
    if Tc <= 16:
        unroll = Tc
    elif Tc % 4 == 0:
        unroll = 4
    elif Tc % 2 == 0:
        unroll = 2
    else:
        unroll = 1
    lax.fori_loop(0, Tc, step, 0, unroll=unroll)


def _pick_time_chunk(T, target=128):
    """Largest divisor of T that is <= target (whole T if T <= target)."""
    if T <= target:
        return T
    for c in range(target, 0, -1):
        if T % c == 0:
            return c
    return T


def gru_block_forward(x, params, *, chunk_t=None, matmul_dtype=jnp.float32):
    """Bidirectional single-layer GRU forward (nn.GRU semantics).

    x: (B, T, I) float32, batch_first layout.
    params: packed weights from init_params().
    Returns (B, T, 2H) float32 = concat(forward hidden, backward hidden).
    Set matmul_dtype=jnp.bfloat16 on v6e/v7x for MXU-rate matmuls (f32
    accumulation and f32 hidden carry are kept either way).
    """
    B, T, I = x.shape
    H = params["whh"].shape[1]

    # ---- Hoisted input projection: one big GEMM over all timesteps/dirs ----
    x_tb = jnp.transpose(x, (1, 0, 2))                        # (T, B, I)
    gi = jnp.einsum(
        "tbi,dig->dtbg",
        x_tb.astype(matmul_dtype), params["wih"].astype(matmul_dtype),
        preferred_element_type=jnp.float32,
    ) + params["gate_bias"][:, None, None, :]                 # (2, T, B, 3H) f32

    whh = params["whh"].astype(matmul_dtype)                  # (2, H, 3H)
    bhn = params["bhn"]                                       # (2, 1, H) f32

    Tc = chunk_t if chunk_t is not None else _pick_time_chunk(T)
    assert T % Tc == 0
    C = T // Tc

    # Direction 1 runs the recurrence over reversed time; its c-th recurrence
    # chunk covers forward-time chunk C-1-c.  (c + d*(C-1-2c)) == c for d=0
    # and C-1-c for d=1.
    def io_map(d, c):
        return (d, c + d * (C - 1 - 2 * c), 0, 0)

    out = pl.pallas_call(
        _gru_chunk_kernel,
        out_shape=jax.ShapeDtypeStruct((2, T, B, H), jnp.float32),
        grid=(2, C),
        in_specs=[
            pl.BlockSpec((None, Tc, B, 3 * H), io_map),
            pl.BlockSpec((None, H, 3 * H), lambda d, c: (d, 0, 0)),
            pl.BlockSpec((None, 1, H), lambda d, c: (d, 0, 0)),
        ],
        out_specs=pl.BlockSpec((None, Tc, B, H), io_map),
        scratch_shapes=[pltpu.VMEM((B, H), jnp.float32)],
        compiler_params=pltpu.CompilerParams(
            # direction axis is independent -> "parallel" (2 TCs on v7x);
            # time-chunk axis carries h in scratch -> "arbitrary".
            dimension_semantics=("parallel", "arbitrary"),
            vmem_limit_bytes=48 * 1024 * 1024,
        ),
    )(gi, whh, bhn)

    # (2, T, B, H) -> (B, T, 2H); both directions are already in forward-time
    # order so no un-reverse pass is needed.
    out_fwd = jnp.transpose(out[0], (1, 0, 2))
    out_bwd = jnp.transpose(out[1], (1, 0, 2))
    return jnp.concatenate([out_fwd, out_bwd], axis=-1)


# ----------------------------- pure-JAX reference -----------------------------

def _gru_dir_ref(x, wih, whh, bih, bhh):
    """Reference for one direction (PyTorch GRU semantics, raw weight layout)."""
    B, T, I = x.shape
    H = whh.shape[1]                       # whh is (3H, H)

    def step(h, x_t):
        gi = x_t @ wih.T + bih
        gh = h @ whh.T + bhh
        r = jax.nn.sigmoid(gi[:, 0:H] + gh[:, 0:H])
        z = jax.nn.sigmoid(gi[:, H:2 * H] + gh[:, H:2 * H])
        n = jnp.tanh(gi[:, 2 * H:] + r * gh[:, 2 * H:])
        h_new = (1.0 - z) * n + z * h
        return h_new, h_new

    h0 = jnp.zeros((B, H), jnp.float32)
    _, ys = lax.scan(step, h0, jnp.swapaxes(x, 0, 1))
    return jnp.swapaxes(ys, 0, 1)


def gru_block_ref(x, raw):
    fwd = _gru_dir_ref(x, raw["wih_f"], raw["whh_f"], raw["bih_f"], raw["bhh_f"])
    bwd = _gru_dir_ref(x[:, ::-1, :], raw["wih_b"], raw["whh_b"],
                       raw["bih_b"], raw["bhh_b"])[:, ::-1, :]
    return jnp.concatenate([fwd, bwd], axis=-1)


# ----------------------------- parameter packing ------------------------------

def init_params(key, in_channels, out_channels):
    """Deterministic init mirroring nn.GRU shapes (uniform +-1/sqrt(H))."""
    H, I = out_channels, in_channels
    k = 1.0 / jnp.sqrt(jnp.float32(H))
    keys = jax.random.split(key, 8)
    names = ["wih_f", "whh_f", "bih_f", "bhh_f",
             "wih_b", "whh_b", "bih_b", "bhh_b"]
    shapes = [(3 * H, I), (3 * H, H), (3 * H,), (3 * H,)] * 2
    raw = {n: jax.random.uniform(kk, s, jnp.float32, -k, k)
           for n, kk, s in zip(names, keys, shapes)}

    def pack(wih, whh, bih, bhh):
        # Fold b_ih (all gates) + b_hh for r,z into the precomputed gi bias;
        # keep b_hh_n separate (it must stay inside the r*(...) term).
        gate_bias = bih + jnp.concatenate(
            [bhh[:2 * H], jnp.zeros((H,), jnp.float32)])
        return wih.T, whh.T, gate_bias, bhh[2 * H:][None, :]

    packed = [pack(raw[f"wih_{s}"], raw[f"whh_{s}"],
                   raw[f"bih_{s}"], raw[f"bhh_{s}"]) for s in ("f", "b")]
    params = {
        "wih": jnp.stack([p[0] for p in packed]),        # (2, I, 3H)
        "whh": jnp.stack([p[1] for p in packed]),        # (2, H, 3H)
        "gate_bias": jnp.stack([p[2] for p in packed]),  # (2, 3H)
        "bhn": jnp.stack([p[3] for p in packed]),        # (2, 1, H)
    }
    return params, raw


if __name__ == "__main__":
    key = jax.random.PRNGKey(0)
    B, T, in_channels, out_channels = 2, 8, 4, 32

    kx, kp = jax.random.split(key)
    x = jax.random.normal(kx, (B, T, in_channels), jnp.float32)
    params, raw = init_params(kp, in_channels, out_channels)

    out = jax.block_until_ready(gru_block_forward(x, params))
    assert out.shape == (B, T, 2 * out_channels), out.shape

    ref = jax.block_until_ready(gru_block_ref(x, raw))
    err = float(jnp.max(jnp.abs(out - ref)))
    assert jnp.allclose(out, ref, atol=1e-5, rtol=1e-5), err

    print("KERNEL_OK")
</pallas_src>

<mosaic_0001>
module attributes {stable_mosaic.version = 11 : i64} {
  func.func @_gru_chunk_kernel(%arg0: i32, %arg1: i32, %arg2: memref<1x8x2x96xf32, #tpu.memory_space<vmem>>, %arg3: memref<1x32x96xf32, #tpu.memory_space<vmem>>, %arg4: memref<1x1x32xf32, #tpu.memory_space<vmem>>, %arg5: memref<1x8x2x32xf32, #tpu.memory_space<vmem>>, %arg6: memref<2x32xf32, #tpu.memory_space<vmem>>) attributes {dimension_semantics = [#tpu.dimension_semantics<parallel>, #tpu.dimension_semantics<arbitrary>], iteration_bounds = array<i64: 2, 1>, scalar_prefetch = 0 : i64, scratch_operands = 1 : i64, tpu.core_type = #tpu.core_type<tc>, window_params = [{transform_indices = @transform_0, window_bounds = array<i64: 1, 8, 2, 96>}, {transform_indices = @transform_1, window_bounds = array<i64: 1, 32, 96>}, {transform_indices = @transform_2, window_bounds = array<i64: 1, 1, 32>}, {transform_indices = @transform_3, window_bounds = array<i64: 1, 8, 2, 32>}]} {
    %c0_i32 = arith.constant 0 : i32
    %0 = arith.cmpi eq, %arg1, %c0_i32 : i32
    %1 = arith.extui %0 : i1 to i32
    %c0_i32_0 = arith.constant 0 : i32
    %2 = arith.cmpi ne, %1, %c0_i32_0 : i32
    scf.if %2 {
      %cst_126 = arith.constant 0.000000e+00 : f32
      %327 = vector.broadcast %cst_126 : f32 to vector<2x32xf32>
      %c0_127 = arith.constant 0 : index
      %c0_128 = arith.constant 0 : index
      %328 = vector.load %arg6[%c0_127, %c0_128] : memref<2x32xf32, #tpu.memory_space<vmem>>, vector<2x32xf32>
      tpu.vector_store %arg6[%c0_127, %c0_128], %327 {strides = array<i32>} : memref<2x32xf32, #tpu.memory_space<vmem>>, vector<2x32xf32>,
    } else {
    }
    %c0 = arith.constant 0 : index
    %c0_1 = arith.constant 0 : index
    %c0_2 = arith.constant 0 : index
    %3 = vector.load %arg3[%c0, %c0_1, %c0_2] : memref<1x32x96xf32, #tpu.memory_space<vmem>>, vector<1x32x96xf32>
    %4 = vector.shape_cast %3 : vector<1x32x96xf32> to vector<32x96xf32>
    %c0_3 = arith.constant 0 : index
    %c0_4 = arith.constant 0 : index
    %c0_5 = arith.constant 0 : index
    %5 = vector.load %arg4[%c0_3, %c0_4, %c0_5] : memref<1x1x32xf32, #tpu.memory_space<vmem>>, vector<1x1x32xf32>
    %6 = vector.shape_cast %5 : vector<1x1x32xf32> to vector<1x32xf32>
    %c0_i32_6 = arith.constant 0 : i32
    %c2_i32 = arith.constant 2 : i32
    %7 = arith.muli %c2_i32, %c0_i32_6 : i32
    %c7_i32 = arith.constant 7 : i32
    %8 = arith.subi %c7_i32, %7 : i32
    %9 = arith.muli %arg0, %8 : i32
    %10 = arith.addi %c0_i32_6, %9 : i32
    %c0_7 = arith.constant 0 : index
    %11 = arith.index_cast %10 : i32 to index
    %c0_8 = arith.constant 0 : index
    %c0_9 = arith.constant 0 : index
    %12 = vector.load %arg2[%c0_7, %11, %c0_8, %c0_9] : memref<1x8x2x96xf32, #tpu.memory_space<vmem>>, vector<1x1x2x96xf32>
    %13 = vector.shape_cast %12 : vector<1x1x2x96xf32> to vector<2x96xf32>
    %c0_10 = arith.constant 0 : index
    %c0_11 = arith.constant 0 : index
    %14 = vector.load %arg6[%c0_10, %c0_11] : memref<2x32xf32, #tpu.memory_space<vmem>>, vector<2x32xf32>
    %cst = arith.constant dense<0.000000e+00> : vector<2x96xf32>
    %15 = tpu.matmul %14, %4, %cst {dimension_numbers = #tpu.dot_dimension_numbers<[1], [0], [0], [1], [0, 0, 1, 1], [], []>} : vector<2x32xf32>, vector<32x96xf32>, vector<2x96xf32> -> vector<2x96xf32>
    %16 = vector.extract_strided_slice %13 {offsets = [0, 0], sizes = [2, 32], strides = [1, 1]} : vector<2x96xf32> to vector<2x32xf32>
    %17 = vector.extract_strided_slice %15 {offsets = [0, 0], sizes = [2, 32], strides = [1, 1]} : vector<2x96xf32> to vector<2x32xf32>
    %18 = arith.addf %16, %17 : vector<2x32xf32>
    %19 = arith.negf %18 : vector<2x32xf32>
    %20 = math.exp %19 : vector<2x32xf32>
    %cst_12 = arith.constant 1.000000e+00 : f32
    %21 = vector.broadcast %cst_12 : f32 to vector<2x32xf32>
    %22 = arith.addf %21, %20 : vector<2x32xf32>
    %23 = arith.divf %21, %22 : vector<2x32xf32>
    %24 = vector.extract_strided_slice %13 {offsets = [0, 32], sizes = [2, 32], strides = [1, 1]} : vector<2x96xf32> to vector<2x32xf32>
    %25 = vector.extract_strided_slice %15 {offsets = [0, 32], sizes = [2, 32], strides = [1, 1]} : vector<2x96xf32> to vector<2x32xf32>
    %26 = arith.addf %24, %25 : vector<2x32xf32>
    %27 = arith.negf %26 : vector<2x32xf32>
    %28 = math.exp %27 : vector<2x32xf32>
    %cst_13 = arith.constant 1.000000e+00 : f32
    %29 = vector.broadcast %cst_13 : f32 to vector<2x32xf32>
    %30 = arith.addf %29, %28 : vector<2x32xf32>
    %31 = arith.divf %29, %30 : vector<2x32xf32>
    %32 = vector.extract_strided_slice %13 {offsets = [0, 64], sizes = [2, 32], strides = [1, 1]} : vector<2x96xf32> to vector<2x32xf32>
    %33 = vector.extract_strided_slice %15 {offsets = [0, 64], sizes = [2, 32], strides = [1, 1]} : vector<2x96xf32> to vector<2x32xf32>
    %34 = vector.broadcast %6 : vector<1x32xf32> to vector<2x32xf32>
    %35 = arith.addf %33, %34 : vector<2x32xf32>
    %36 = arith.mulf %23, %35 : vector<2x32xf32>
    %37 = arith.addf %32, %36 : vector<2x32xf32>
    %38 = math.tanh %37 : vector<2x32xf32>
    %39 = arith.subf %14, %38 : vector<2x32xf32>
    %40 = arith.mulf %31, %39 : vector<2x32xf32>
    %41 = arith.addf %38, %40 : vector<2x32xf32>
    %c0_14 = arith.constant 0 : index
    %c0_15 = arith.constant 0 : index
    %42 = vector.load %arg6[%c0_14, %c0_15] : memref<2x32xf32, #tpu.memory_space<vmem>>, vector<2x32xf32>
    tpu.vector_store %arg6[%c0_14, %c0_15], %41 {strides = array<i32>} : memref<2x32xf32, #tpu.memory_space<vmem>>, vector<2x32xf32>,
    %c0_16 = arith.constant 0 : index
    %43 = arith.index_cast %10 : i32 to index
    %c0_17 = arith.constant 0 : index
    %c0_18 = arith.constant 0 : index
    %44 = vector.load %arg5[%c0_16, %43, %c0_17, %c0_18] : memref<1x8x2x32xf32, #tpu.memory_space<vmem>>, vector<1x1x2x32xf32>
    %45 = vector.shape_cast %44 : vector<1x1x2x32xf32> to vector<2x32xf32>
    %46 = vector.shape_cast %41 : vector<2x32xf32> to vector<1x1x2x32xf32>
    tpu.vector_store %arg5[%c0_16, %43, %c0_17, %c0_18], %46 {strides = array<i32>} : memref<1x8x2x32xf32, #tpu.memory_space<vmem>>, vector<1x1x2x32xf32>,
    %c1_i32 = arith.constant 1 : i32
    %c2_i32_19 = arith.constant 2 : i32
    %47 = arith.muli %c2_i32_19, %c1_i32 : i32
    %c7_i32_20 = arith.constant 7 : i32
    %48 = arith.subi %c7_i32_20, %47 : i32
    %49 = arith.muli %arg0, %48 : i32
    %50 = arith.addi %c1_i32, %49 : i32
    %c0_21 = arith.constant 0 : index
    %51 = arith.index_cast %50 : i32 to index
    %c0_22 = arith.constant 0 : index
    %c0_23 = arith.constant 0 : index
    %52 = vector.load %arg2[%c0_21, %51, %c0_22, %c0_23] : memref<1x8x2x96xf32, #tpu.memory_space<vmem>>, vector<1x1x2x96xf32>
    %53 = vector.shape_cast %52 : vector<1x1x2x96xf32> to vector<2x96xf32>
    %c0_24 = arith.constant 0 : index
    %c0_25 = arith.constant 0 : index
    %54 = vector.load %arg6[%c0_24, %c0_25] : memref<2x32xf32, #tpu.memory_space<vmem>>, vector<2x32xf32>
    %cst_26 = arith.constant dense<0.000000e+00> : vector<2x96xf32>
    %55 = tpu.matmul %54, %4, %cst_26 {dimension_numbers = #tpu.dot_dimension_numbers<[1], [0], [0], [1], [0, 0, 1, 1], [], []>} : vector<2x32xf32>, vector<32x96xf32>, vector<2x96xf32> -> vector<2x96xf32>
    %56 = vector.extract_strided_slice %53 {offsets = [0, 0], sizes = [2, 32], strides = [1, 1]} : vector<2x96xf32> to vector<2x32xf32>
    %57 = vector.extract_strided_slice %55 {offsets = [0, 0], sizes = [2, 32], strides = [1, 1]} : vector<2x96xf32> to vector<2x32xf32>
    %58 = arith.addf %56, %57 : vector<2x32xf32>
    %59 = arith.negf %58 : vector<2x32xf32>
    %60 = math.exp %59 : vector<2x32xf32>
    %cst_27 = arith.constant 1.000000e+00 : f32
    %61 = vector.broadcast %cst_27 : f32 to vector<2x32xf32>
    %62 = arith.addf %61, %60 : vector<2x32xf32>
    %63 = arith.divf %61, %62 : vector<2x32xf32>
    %64 = vector.extract_strided_slice %53 {offsets = [0, 32], sizes = [2, 32], strides = [1, 1]} : vector<2x96xf32> to vector<2x32xf32>
    %65 = vector.extract_strided_slice %55 {offsets = [0, 32], sizes = [2, 32], strides = [1, 1]} : vector<2x96xf32> to vector<2x32xf32>
    %66 = arith.addf %64, %65 : vector<2x32xf32>
    %67 = arith.negf %66 : vector<2x32xf32>
    %68 = math.exp %67 : vector<2x32xf32>
    %cst_28 = arith.constant 1.000000e+00 : f32
    %69 = vector.broadcast %cst_28 : f32 to vector<2x32xf32>
    %70 = arith.addf %69, %68 : vector<2x32xf32>
    %71 = arith.divf %69, %70 : vector<2x32xf32>
    %72 = vector.extract_strided_slice %53 {offsets = [0, 64], sizes = [2, 32], strides = [1, 1]} : vector<2x96xf32> to vector<2x32xf32>
    %73 = vector.extract_strided_slice %55 {offsets = [0, 64], sizes = [2, 32], strides = [1, 1]} : vector<2x96xf32> to vector<2x32xf32>
    %74 = vector.broadcast %6 : vector<1x32xf32> to vector<2x32xf32>
    %75 = arith.addf %73, %74 : vector<2x32xf32>
    %76 = arith.mulf %63, %75 : vector<2x32xf32>
    %77 = arith.addf %72, %76 : vector<2x32xf32>
    %78 = math.tanh %77 : vector<2x32xf32>
    %79 = arith.subf %54, %78 : vector<2x32xf32>
    %80 = arith.mulf %71, %79 : vector<2x32xf32>
    %81 = arith.addf %78, %80 : vector<2x32xf32>
    %c0_29 = arith.constant 0 : index
    %c0_30 = arith.constant 0 : index
    %82 = vector.load %arg6[%c0_29, %c0_30] : memref<2x32xf32, #tpu.memory_space<vmem>>, vector<2x32xf32>
    tpu.vector_store %arg6[%c0_29, %c0_30], %81 {strides = array<i32>} : memref<2x32xf32, #tpu.memory_space<vmem>>, vector<2x32xf32>,
    %c0_31 = arith.constant 0 : index
    %83 = arith.index_cast %50 : i32 to index
    %c0_32 = arith.constant 0 : index
    %c0_33 = arith.constant 0 : index
    %84 = vector.load %arg5[%c0_31, %83, %c0_32, %c0_33] : memref<1x8x2x32xf32, #tpu.memory_space<vmem>>, vector<1x1x2x32xf32>
    %85 = vector.shape_cast %84 : vector<1x1x2x32xf32> to vector<2x32xf32>
    %86 = vector.shape_cast %81 : vector<2x32xf32> to vector<1x1x2x32xf32>
    tpu.vector_store %arg5[%c0_31, %83, %c0_32, %c0_33], %86 {strides = array<i32>} : memref<1x8x2x32xf32, #tpu.memory_space<vmem>>, vector<1x1x2x32xf32>,
    %c2_i32_34 = arith.constant 2 : i32
    %c2_i32_35 = arith.constant 2 : i32
    %87 = arith.muli %c2_i32_35, %c2_i32_34 : i32
    %c7_i32_36 = arith.constant 7 : i32
    %88 = arith.subi %c7_i32_36, %87 : i32
    %89 = arith.muli %arg0, %88 : i32
    %90 = arith.addi %c2_i32_34, %89 : i32
    %c0_37 = arith.constant 0 : index
    %91 = arith.index_cast %90 : i32 to index
    %c0_38 = arith.constant 0 : index
    %c0_39 = arith.constant 0 : index
    %92 = vector.load %arg2[%c0_37, %91, %c0_38, %c0_39] : memref<1x8x2x96xf32, #tpu.memory_space<vmem>>, vector<1x1x2x96xf32>
    %93 = vector.shape_cast %92 : vector<1x1x2x96xf32> to vector<2x96xf32>
    %c0_40 = arith.constant 0 : index
    %c0_41 = arith.constant 0 : index
    %94 = vector.load %arg6[%c0_40, %c0_41] : memref<2x32xf32, #tpu.memory_space<vmem>>, vector<2x32xf32>
    %cst_42 = arith.constant dense<0.000000e+00> : vector<2x96xf32>
    %95 = tpu.matmul %94, %4, %cst_42 {dimension_numbers = #tpu.dot_dimension_numbers<[1], [0], [0], [1], [0, 0, 1, 1], [], []>} : vector<2x32xf32>, vector<32x96xf32>, vector<2x96xf32> -> vector<2x96xf32>
    %96 = vector.extract_strided_slice %93 {offsets = [0, 0], sizes = [2, 32], strides = [1, 1]} : vector<2x96xf32> to vector<2x32xf32>
    %97 = vector.extract_strided_slice %95 {offsets = [0, 0], sizes = [2, 32], strides = [1, 1]} : vector<2x96xf32> to vector<2x32xf32>
    %98 = arith.addf %96, %97 : vector<2x32xf32>
    %99 = arith.negf %98 : vector<2x32xf32>
    %100 = math.exp %99 : vector<2x32xf32>
    %cst_43 = arith.constant 1.000000e+00 : f32
    %101 = vector.broadcast %cst_43 : f32 to vector<2x32xf32>
    %102 = arith.addf %101, %100 : vector<2x32xf32>
    %103 = arith.divf %101, %102 : vector<2x32xf32>
    %104 = vector.extract_strided_slice %93 {offsets = [0, 32], sizes = [2, 32], strides = [1, 1]} : vector<2x96xf32> to vector<2x32xf32>
    %105 = vector.extract_strided_slice %95 {offsets = [0, 32], sizes = [2, 32], strides = [1, 1]} : vector<2x96xf32> to vector<2x32xf32>
    %106 = arith.addf %104, %105 : vector<2x32xf32>
    %107 = arith.negf %106 : vector<2x32xf32>
    %108 = math.exp %107 : vector<2x32xf32>
    %cst_44 = arith.constant 1.000000e+00 : f32
    %109 = vector.broadcast %cst_44 : f32 to vector<2x32xf32>
    %110 = arith.addf %109, %108 : vector<2x32xf32>
    %111 = arith.divf %109, %110 : vector<2x32xf32>
    %112 = vector.extract_strided_slice %93 {offsets = [0, 64], sizes = [2, 32], strides = [1, 1]} : vector<2x96xf32> to vector<2x32xf32>
    %113 = vector.extract_strided_slice %95 {offsets = [0, 64], sizes = [2, 32], strides = [1, 1]} : vector<2x96xf32> to vector<2x32xf32>
    %114 = vector.broadcast %6 : vector<1x32xf32> to vector<2x32xf32>
    %115 = arith.addf %113, %114 : vector<2x32xf32>
    %116 = arith.mulf %103, %115 : vector<2x32xf32>
    %117 = arith.addf %112, %116 : vector<2x32xf32>
    %118 = math.tanh %117 : vector<2x32xf32>
    %119 = arith.subf %94, %118 : vector<2x32xf32>
    %120 = arith.mulf %111, %119 : vector<2x32xf32>
    %121 = arith.addf %118, %120 : vector<2x32xf32>
    %c0_45 = arith.constant 0 : index
    %c0_46 = arith.constant 0 : index
    %122 = vector.load %arg6[%c0_45, %c0_46] : memref<2x32xf32, #tpu.memory_space<vmem>>, vector<2x32xf32>
    tpu.vector_store %arg6[%c0_45, %c0_46], %121 {strides = array<i32>} : memref<2x32xf32, #tpu.memory_space<vmem>>, vector<2x32xf32>,
    %c0_47 = arith.constant 0 : index
    %123 = arith.index_cast %90 : i32 to index
    %c0_48 = arith.constant 0 : index
    %c0_49 = arith.constant 0 : index
    %124 = vector.load %arg5[%c0_47, %123, %c0_48, %c0_49] : memref<1x8x2x32xf32, #tpu.memory_space<vmem>>, vector<1x1x2x32xf32>
    %125 = vector.shape_cast %124 : vector<1x1x2x32xf32> to vector<2x32xf32>
    %126 = vector.shape_cast %121 : vector<2x32xf32> to vector<1x1x2x32xf32>
    tpu.vector_store %arg5[%c0_47, %123, %c0_48, %c0_49], %126 {strides = array<i32>} : memref<1x8x2x32xf32, #tpu.memory_space<vmem>>, vector<1x1x2x32xf32>,
    %c3_i32 = arith.constant 3 : i32
    %c2_i32_50 = arith.constant 2 : i32
    %127 = arith.muli %c2_i32_50, %c3_i32 : i32
    %c7_i32_51 = arith.constant 7 : i32
    %128 = arith.subi %c7_i32_51, %127 : i32
    %129 = arith.muli %arg0, %128 : i32
    %130 = arith.addi %c3_i32, %129 : i32
    %c0_52 = arith.constant 0 : index
    %131 = arith.index_cast %130 : i32 to index
    %c0_53 = arith.constant 0 : index
    %c0_54 = arith.constant 0 : index
    %132 = vector.load %arg2[%c0_52, %131, %c0_53, %c0_54] : memref<1x8x2x96xf32, #tpu.memory_space<vmem>>, vector<1x1x2x96xf32>
    %133 = vector.shape_cast %132 : vector<1x1x2x96xf32> to vector<2x96xf32>
    %c0_55 = arith.constant 0 : index
    %c0_56 = arith.constant 0 : index
    %134 = vector.load %arg6[%c0_55, %c0_56] : memref<2x32xf32, #tpu.memory_space<vmem>>, vector<2x32xf32>
    %cst_57 = arith.constant dense<0.000000e+00> : vector<2x96xf32>
    %135 = tpu.matmul %134, %4, %cst_57 {dimension_numbers = #tpu.dot_dimension_numbers<[1], [0], [0], [1], [0, 0, 1, 1], [], []>} : vector<2x32xf32>, vector<32x96xf32>, vector<2x96xf32> -> vector<2x96xf32>
    %136 = vector.extract_strided_slice %133 {offsets = [0, 0], sizes = [2, 32], strides = [1, 1]} : vector<2x96xf32> to vector<2x32xf32>
    %137 = vector.extract_strided_slice %135 {offsets = [0, 0], sizes = [2, 32], strides = [1, 1]} : vector<2x96xf32> to vector<2x32xf32>
    %138 = arith.addf %136, %137 : vector<2x32xf32>
    %139 = arith.negf %138 : vector<2x32xf32>
    %140 = math.exp %139 : vector<2x32xf32>
    %cst_58 = arith.constant 1.000000e+00 : f32
    %141 = vector.broadcast %cst_58 : f32 to vector<2x32xf32>
    %142 = arith.addf %141, %140 : vector<2x32xf32>
    %143 = arith.divf %141, %142 : vector<2x32xf32>
    %144 = vector.extract_strided_slice %133 {offsets = [0, 32], sizes = [2, 32], strides = [1, 1]} : vector<2x96xf32> to vector<2x32xf32>
    %145 = vector.extract_strided_slice %135 {offsets = [0, 32], sizes = [2, 32], strides = [1, 1]} : vector<2x96xf32> to vector<2x32xf32>
    %146 = arith.addf %144, %145 : vector<2x32xf32>
    %147 = arith.negf %146 : vector<2x32xf32>
    %148 = math.exp %147 : vector<2x32xf32>
    %cst_59 = arith.constant 1.000000e+00 : f32
    %149 = vector.broadcast %cst_59 : f32 to vector<2x32xf32>
    %150 = arith.addf %149, %148 : vector<2x32xf32>
    %151 = arith.divf %149, %150 : vector<2x32xf32>
    %152 = vector.extract_strided_slice %133 {offsets = [0, 64], sizes = [2, 32], strides = [1, 1]} : vector<2x96xf32> to vector<2x32xf32>
    %153 = vector.extract_strided_slice %135 {offsets = [0, 64], sizes = [2, 32], strides = [1, 1]} : vector<2x96xf32> to vector<2x32xf32>
    %154 = vector.broadcast %6 : vector<1x32xf32> to vector<2x32xf32>
    %155 = arith.addf %153, %154 : vector<2x32xf32>
    %156 = arith.mulf %143, %155 : vector<2x32xf32>
    %157 = arith.addf %152, %156 : vector<2x32xf32>
    %158 = math.tanh %157 : vector<2x32xf32>
    %159 = arith.subf %134, %158 : vector<2x32xf32>
    %160 = arith.mulf %151, %159 : vector<2x32xf32>
    %161 = arith.addf %158, %160 : vector<2x32xf32>
    %c0_60 = arith.constant 0 : index
    %c0_61 = arith.constant 0 : index
    %162 = vector.load %arg6[%c0_60, %c0_61] : memref<2x32xf32, #tpu.memory_space<vmem>>, vector<2x32xf32>
    tpu.vector_store %arg6[%c0_60, %c0_61], %161 {strides = array<i32>} : memref<2x32xf32, #tpu.memory_space<vmem>>, vector<2x32xf32>,
    %c0_62 = arith.constant 0 : index
    %163 = arith.index_cast %130 : i32 to index
    %c0_63 = arith.constant 0 : index
    %c0_64 = arith.constant 0 : index
    %164 = vector.load %arg5[%c0_62, %163, %c0_63, %c0_64] : memref<1x8x2x32xf32, #tpu.memory_space<vmem>>, vector<1x1x2x32xf32>
    %165 = vector.shape_cast %164 : vector<1x1x2x32xf32> to vector<2x32xf32>
    %166 = vector.shape_cast %161 : vector<2x32xf32> to vector<1x1x2x32xf32>
    tpu.vector_store %arg5[%c0_62, %163, %c0_63, %c0_64], %166 {strides = array<i32>} : memref<1x8x2x32xf32, #tpu.memory_space<vmem>>, vector<1x1x2x32xf32>,
    %c4_i32 = arith.constant 4 : i32
    %c2_i32_65 = arith.constant 2 : i32
    %167 = arith.muli %c2_i32_65, %c4_i32 : i32
    %c7_i32_66 = arith.constant 7 : i32
    %168 = arith.subi %c7_i32_66, %167 : i32
    %169 = arith.muli %arg0, %168 : i32
    %170 = arith.addi %c4_i32, %169 : i32
    %c0_67 = arith.constant 0 : index
    %171 = arith.index_cast %170 : i32 to index
    %c0_68 = arith.constant 0 : index
    %c0_69 = arith.constant 0 : index
    %172 = vector.load %arg2[%c0_67, %171, %c0_68, %c0_69] : memref<1x8x2x96xf32, #tpu.memory_space<vmem>>, vector<1x1x2x96xf32>
    %173 = vector.shape_cast %172 : vector<1x1x2x96xf32> to vector<2x96xf32>
    %c0_70 = arith.constant 0 : index
    %c0_71 = arith.constant 0 : index
    %174 = vector.load %arg6[%c0_70, %c0_71] : memref<2x32xf32, #tpu.memory_space<vmem>>, vector<2x32xf32>
    %cst_72 = arith.constant dense<0.000000e+00> : vector<2x96xf32>
    %175 = tpu.matmul %174, %4, %cst_72 {dimension_numbers = #tpu.dot_dimension_numbers<[1], [0], [0], [1], [0, 0, 1, 1], [], []>} : vector<2x32xf32>, vector<32x96xf32>, vector<2x96xf32> -> vector<2x96xf32>
    %176 = vector.extract_strided_slice %173 {offsets = [0, 0], sizes = [2, 32], strides = [1, 1]} : vector<2x96xf32> to vector<2x32xf32>
    %177 = vector.extract_strided_slice %175 {offsets = [0, 0], sizes = [2, 32], strides = [1, 1]} : vector<2x96xf32> to vector<2x32xf32>
    %178 = arith.addf %176, %177 : vector<2x32xf32>
    %179 = arith.negf %178 : vector<2x32xf32>
    %180 = math.exp %179 : vector<2x32xf32>
    %cst_73 = arith.constant 1.000000e+00 : f32
    %181 = vector.broadcast %cst_73 : f32 to vector<2x32xf32>
    %182 = arith.addf %181, %180 : vector<2x32xf32>
    %183 = arith.divf %181, %182 : vector<2x32xf32>
    %184 = vector.extract_strided_slice %173 {offsets = [0, 32], sizes = [2, 32], strides = [1, 1]} : vector<2x96xf32> to vector<2x32xf32>
    %185 = vector.extract_strided_slice %175 {offsets = [0, 32], sizes = [2, 32], strides = [1, 1]} : vector<2x96xf32> to vector<2x32xf32>
    %186 = arith.addf %184, %185 : vector<2x32xf32>
    %187 = arith.negf %186 : vector<2x32xf32>
    %188 = math.exp %187 : vector<2x32xf32>
    %cst_74 = arith.constant 1.000000e+00 : f32
    %189 = vector.broadcast %cst_74 : f32 to vector<2x32xf32>
    %190 = arith.addf %189, %188 : vector<2x32xf32>
    %191 = arith.divf %189, %190 : vector<2x32xf32>
    %192 = vector.extract_strided_slice %173 {offsets = [0, 64], sizes = [2, 32], strides = [1, 1]} : vector<2x96xf32> to vector<2x32xf32>
    %193 = vector.extract_strided_slice %175 {offsets = [0, 64], sizes = [2, 32], strides = [1, 1]} : vector<2x96xf32> to vector<2x32xf32>
    %194 = vector.broadcast %6 : vector<1x32xf32> to vector<2x32xf32>
    %195 = arith.addf %193, %194 : vector<2x32xf32>
    %196 = arith.mulf %183, %195 : vector<2x32xf32>
    %197 = arith.addf %192, %196 : vector<2x32xf32>
    %198 = math.tanh %197 : vector<2x32xf32>
    %199 = arith.subf %174, %198 : vector<2x32xf32>
    %200 = arith.mulf %191, %199 : vector<2x32xf32>
    %201 = arith.addf %198, %200 : vector<2x32xf32>
    %c0_75 = arith.constant 0 : index
    %c0_76 = arith.constant 0 : index
    %202 = vector.load %arg6[%c0_75, %c0_76] : memref<2x32xf32, #tpu.memory_space<vmem>>, vector<2x32xf32>
    tpu.vector_store %arg6[%c0_75, %c0_76], %201 {strides = array<i32>} : memref<2x32xf32, #tpu.memory_space<vmem>>, vector<2x32xf32>,
    %c0_77 = arith.constant 0 : index
    %203 = arith.index_cast %170 : i32 to index
    %c0_78 = arith.constant 0 : index
    %c0_79 = arith.constant 0 : index
    %204 = vector.load %arg5[%c0_77, %203, %c0_78, %c0_79] : memref<1x8x2x32xf32, #tpu.memory_space<vmem>>, vector<1x1x2x32xf32>
    %205 = vector.shape_cast %204 : vector<1x1x2x32xf32> to vector<2x32xf32>
    %206 = vector.shape_cast %201 : vector<2x32xf32> to vector<1x1x2x32xf32>
    tpu.vector_store %arg5[%c0_77, %203, %c0_78, %c0_79], %206 {strides = array<i32>} : memref<1x8x2x32xf32, #tpu.memory_space<vmem>>, vector<1x1x2x32xf32>,
    %c5_i32 = arith.constant 5 : i32
    %c2_i32_80 = arith.constant 2 : i32
    %207 = arith.muli %c2_i32_80, %c5_i32 : i32
    %c7_i32_81 = arith.constant 7 : i32
    %208 = arith.subi %c7_i32_81, %207 : i32
    %209 = arith.muli %arg0, %208 : i32
    %210 = arith.addi %c5_i32, %209 : i32
    %c0_82 = arith.constant 0 : index
    %211 = arith.index_cast %210 : i32 to index
    %c0_83 = arith.constant 0 : index
    %c0_84 = arith.constant 0 : index
    %212 = vector.load %arg2[%c0_82, %211, %c0_83, %c0_84] : memref<1x8x2x96xf32, #tpu.memory_space<vmem>>, vector<1x1x2x96xf32>
    %213 = vector.shape_cast %212 : vector<1x1x2x96xf32> to vector<2x96xf32>
    %c0_85 = arith.constant 0 : index
    %c0_86 = arith.constant 0 : index
    %214 = vector.load %arg6[%c0_85, %c0_86] : memref<2x32xf32, #tpu.memory_space<vmem>>, vector<2x32xf32>
    %cst_87 = arith.constant dense<0.000000e+00> : vector<2x96xf32>
    %215 = tpu.matmul %214, %4, %cst_87 {dimension_numbers = #tpu.dot_dimension_numbers<[1], [0], [0], [1], [0, 0, 1, 1], [], []>} : vector<2x32xf32>, vector<32x96xf32>, vector<2x96xf32> -> vector<2x96xf32>
    %216 = vector.extract_strided_slice %213 {offsets = [0, 0], sizes = [2, 32], strides = [1, 1]} : vector<2x96xf32> to vector<2x32xf32>
    %217 = vector.extract_strided_slice %215 {offsets = [0, 0], sizes = [2, 32], strides = [1, 1]} : vector<2x96xf32> to vector<2x32xf32>
    %218 = arith.addf %216, %217 : vector<2x32xf32>
    %219 = arith.negf %218 : vector<2x32xf32>
    %220 = math.exp %219 : vector<2x32xf32>
    %cst_88 = arith.constant 1.000000e+00 : f32
    %221 = vector.broadcast %cst_88 : f32 to vector<2x32xf32>
    %222 = arith.addf %221, %220 : vector<2x32xf32>
    %223 = arith.divf %221, %222 : vector<2x32xf32>
    %224 = vector.extract_strided_slice %213 {offsets = [0, 32], sizes = [2, 32], strides = [1, 1]} : vector<2x96xf32> to vector<2x32xf32>
    %225 = vector.extract_strided_slice %215 {offsets = [0, 32], sizes = [2, 32], strides = [1, 1]} : vector<2x96xf32> to vector<2x32xf32>
    %226 = arith.addf %224, %225 : vector<2x32xf32>
    %227 = arith.negf %226 : vector<2x32xf32>
    %228 = math.exp %227 : vector<2x32xf32>
    %cst_89 = arith.constant 1.000000e+00 : f32
    %229 = vector.broadcast %cst_89 : f32 to vector<2x32xf32>
    %230 = arith.addf %229, %228 : vector<2x32xf32>
    %231 = arith.divf %229, %230 : vector<2x32xf32>
    %232 = vector.extract_strided_slice %213 {offsets = [0, 64], sizes = [2, 32], strides = [1, 1]} : vector<2x96xf32> to vector<2x32xf32>
    %233 = vector.extract_strided_slice %215 {offsets = [0, 64], sizes = [2, 32], strides = [1, 1]} : vector<2x96xf32> to vector<2x32xf32>
    %234 = vector.broadcast %6 : vector<1x32xf32> to vector<2x32xf32>
    %235 = arith.addf %233, %234 : vector<2x32xf32>
    %236 = arith.mulf %223, %235 : vector<2x32xf32>
    %237 = arith.addf %232, %236 : vector<2x32xf32>
    %238 = math.tanh %237 : vector<2x32xf32>
    %239 = arith.subf %214, %238 : vector<2x32xf32>
    %240 = arith.mulf %231, %239 : vector<2x32xf32>
    %241 = arith.addf %238, %240 : vector<2x32xf32>
    %c0_90 = arith.constant 0 : index
    %c0_91 = arith.constant 0 : index
    %242 = vector.load %arg6[%c0_90, %c0_91] : memref<2x32xf32, #tpu.memory_space<vmem>>, vector<2x32xf32>
    tpu.vector_store %arg6[%c0_90, %c0_91], %241 {strides = array<i32>} : memref<2x32xf32, #tpu.memory_space<vmem>>, vector<2x32xf32>,
    %c0_92 = arith.constant 0 : index
    %243 = arith.index_cast %210 : i32 to index
    %c0_93 = arith.constant 0 : index
    %c0_94 = arith.constant 0 : index
    %244 = vector.load %arg5[%c0_92, %243, %c0_93, %c0_94] : memref<1x8x2x32xf32, #tpu.memory_space<vmem>>, vector<1x1x2x32xf32>
    %245 = vector.shape_cast %244 : vector<1x1x2x32xf32> to vector<2x32xf32>
    %246 = vector.shape_cast %241 : vector<2x32xf32> to vector<1x1x2x32xf32>
    tpu.vector_store %arg5[%c0_92, %243, %c0_93, %c0_94], %246 {strides = array<i32>} : memref<1x8x2x32xf32, #tpu.memory_space<vmem>>, vector<1x1x2x32xf32>,
    %c6_i32 = arith.constant 6 : i32
    %c2_i32_95 = arith.constant 2 : i32
    %247 = arith.muli %c2_i32_95, %c6_i32 : i32
    %c7_i32_96 = arith.constant 7 : i32
    %248 = arith.subi %c7_i32_96, %247 : i32
    %249 = arith.muli %arg0, %248 : i32
    %250 = arith.addi %c6_i32, %249 : i32
    %c0_97 = arith.constant 0 : index
    %251 = arith.index_cast %250 : i32 to index
    %c0_98 = arith.constant 0 : index
    %c0_99 = arith.constant 0 : index
    %252 = vector.load %arg2[%c0_97, %251, %c0_98, %c0_99] : memref<1x8x2x96xf32, #tpu.memory_space<vmem>>, vector<1x1x2x96xf32>
    %253 = vector.shape_cast %252 : vector<1x1x2x96xf32> to vector<2x96xf32>
    %c0_100 = arith.constant 0 : index
    %c0_101 = arith.constant 0 : index
    %254 = vector.load %arg6[%c0_100, %c0_101] : memref<2x32xf32, #tpu.memory_space<vmem>>, vector<2x32xf32>
    %cst_102 = arith.constant dense<0.000000e+00> : vector<2x96xf32>
    %255 = tpu.matmul %254, %4, %cst_102 {dimension_numbers = #tpu.dot_dimension_numbers<[1], [0], [0], [1], [0, 0, 1, 1], [], []>} : vector<2x32xf32>, vector<32x96xf32>, vector<2x96xf32> -> vector<2x96xf32>
    %256 = vector.extract_strided_slice %253 {offsets = [0, 0], sizes = [2, 32], strides = [1, 1]} : vector<2x96xf32> to vector<2x32xf32>
    %257 = vector.extract_strided_slice %255 {offsets = [0, 0], sizes = [2, 32], strides = [1, 1]} : vector<2x96xf32> to vector<2x32xf32>
    %258 = arith.addf %256, %257 : vector<2x32xf32>
    %259 = arith.negf %258 : vector<2x32xf32>
    %260 = math.exp %259 : vector<2x32xf32>
    %cst_103 = arith.constant 1.000000e+00 : f32
    %261 = vector.broadcast %cst_103 : f32 to vector<2x32xf32>
    %262 = arith.addf %261, %260 : vector<2x32xf32>
    %263 = arith.divf %261, %262 : vector<2x32xf32>
    %264 = vector.extract_strided_slice %253 {offsets = [0, 32], sizes = [2, 32], strides = [1, 1]} : vector<2x96xf32> to vector<2x32xf32>
    %265 = vector.extract_strided_slice %255 {offsets = [0, 32], sizes = [2, 32], strides = [1, 1]} : vector<2x96xf32> to vector<2x32xf32>
    %266 = arith.addf %264, %265 : vector<2x32xf32>
    %267 = arith.negf %266 : vector<2x32xf32>
    %268 = math.exp %267 : vector<2x32xf32>
    %cst_104 = arith.constant 1.000000e+00 : f32
    %269 = vector.broadcast %cst_104 : f32 to vector<2x32xf32>
    %270 = arith.addf %269, %268 : vector<2x32xf32>
    %271 = arith.divf %269, %270 : vector<2x32xf32>
    %272 = vector.extract_strided_slice %253 {offsets = [0, 64], sizes = [2, 32], strides = [1, 1]} : vector<2x96xf32> to vector<2x32xf32>
    %273 = vector.extract_strided_slice %255 {offsets = [0, 64], sizes = [2, 32], strides = [1, 1]} : vector<2x96xf32> to vector<2x32xf32>
    %274 = vector.broadcast %6 : vector<1x32xf32> to vector<2x32xf32>
    %275 = arith.addf %273, %274 : vector<2x32xf32>
    %276 = arith.mulf %263, %275 : vector<2x32xf32>
    %277 = arith.addf %272, %276 : vector<2x32xf32>
    %278 = math.tanh %277 : vector<2x32xf32>
    %279 = arith.subf %254, %278 : vector<2x32xf32>
    %280 = arith.mulf %271, %279 : vector<2x32xf32>
    %281 = arith.addf %278, %280 : vector<2x32xf32>
    %c0_105 = arith.constant 0 : index
    %c0_106 = arith.constant 0 : index
    %282 = vector.load %arg6[%c0_105, %c0_106] : memref<2x32xf32, #tpu.memory_space<vmem>>, vector<2x32xf32>
    tpu.vector_store %arg6[%c0_105, %c0_106], %281 {strides = array<i32>} : memref<2x32xf32, #tpu.memory_space<vmem>>, vector<2x32xf32>,
    %c0_107 = arith.constant 0 : index
    %283 = arith.index_cast %250 : i32 to index
    %c0_108 = arith.constant 0 : index
    %c0_109 = arith.constant 0 : index
    %284 = vector.load %arg5[%c0_107, %283, %c0_108, %c0_109] : memref<1x8x2x32xf32, #tpu.memory_space<vmem>>, vector<1x1x2x32xf32>
    %285 = vector.shape_cast %284 : vector<1x1x2x32xf32> to vector<2x32xf32>
    %286 = vector.shape_cast %281 : vector<2x32xf32> to vector<1x1x2x32xf32>
    tpu.vector_store %arg5[%c0_107, %283, %c0_108, %c0_109], %286 {strides = array<i32>} : memref<1x8x2x32xf32, #tpu.memory_space<vmem>>, vector<1x1x2x32xf32>,
    %c7_i32_110 = arith.constant 7 : i32
    %c2_i32_111 = arith.constant 2 : i32
    %287 = arith.muli %c2_i32_111, %c7_i32_110 : i32
    %c7_i32_112 = arith.constant 7 : i32
    %288 = arith.subi %c7_i32_112, %287 : i32
    %289 = arith.muli %arg0, %288 : i32
    %290 = arith.addi %c7_i32_110, %289 : i32
    %c0_113 = arith.constant 0 : index
    %291 = arith.index_cast %290 : i32 to index
    %c0_114 = arith.constant 0 : index
    %c0_115 = arith.constant 0 : index
    %292 = vector.load %arg2[%c0_113, %291, %c0_114, %c0_115] : memref<1x8x2x96xf32, #tpu.memory_space<vmem>>, vector<1x1x2x96xf32>
    %293 = vector.shape_cast %292 : vector<1x1x2x96xf32> to vector<2x96xf32>
    %c0_116 = arith.constant 0 : index
    %c0_117 = arith.constant 0 : index
    %294 = vector.load %arg6[%c0_116, %c0_117] : memref<2x32xf32, #tpu.memory_space<vmem>>, vector<2x32xf32>
    %cst_118 = arith.constant dense<0.000000e+00> : vector<2x96xf32>
    %295 = tpu.matmul %294, %4, %cst_118 {dimension_numbers = #tpu.dot_dimension_numbers<[1], [0], [0], [1], [0, 0, 1, 1], [], []>} : vector<2x32xf32>, vector<32x96xf32>, vector<2x96xf32> -> vector<2x96xf32>
    %296 = vector.extract_strided_slice %293 {offsets = [0, 0], sizes = [2, 32], strides = [1, 1]} : vector<2x96xf32> to vector<2x32xf32>
    %297 = vector.extract_strided_slice %295 {offsets = [0, 0], sizes = [2, 32], strides = [1, 1]} : vector<2x96xf32> to vector<2x32xf32>
    %298 = arith.addf %296, %297 : vector<2x32xf32>
    %299 = arith.negf %298 : vector<2x32xf32>
    %300 = math.exp %299 : vector<2x32xf32>
    %cst_119 = arith.constant 1.000000e+00 : f32
    %301 = vector.broadcast %cst_119 : f32 to vector<2x32xf32>
    %302 = arith.addf %301, %300 : vector<2x32xf32>
    %303 = arith.divf %301, %302 : vector<2x32xf32>
    %304 = vector.extract_strided_slice %293 {offsets = [0, 32], sizes = [2, 32], strides = [1, 1]} : vector<2x96xf32> to vector<2x32xf32>
    %305 = vector.extract_strided_slice %295 {offsets = [0, 32], sizes = [2, 32], strides = [1, 1]} : vector<2x96xf32> to vector<2x32xf32>
    %306 = arith.addf %304, %305 : vector<2x32xf32>
    %307 = arith.negf %306 : vector<2x32xf32>
    %308 = math.exp %307 : vector<2x32xf32>
    %cst_120 = arith.constant 1.000000e+00 : f32
    %309 = vector.broadcast %cst_120 : f32 to vector<2x32xf32>
    %310 = arith.addf %309, %308 : vector<2x32xf32>
    %311 = arith.divf %309, %310 : vector<2x32xf32>
    %312 = vector.extract_strided_slice %293 {offsets = [0, 64], sizes = [2, 32], strides = [1, 1]} : vector<2x96xf32> to vector<2x32xf32>
    %313 = vector.extract_strided_slice %295 {offsets = [0, 64], sizes = [2, 32], strides = [1, 1]} : vector<2x96xf32> to vector<2x32xf32>
    %314 = vector.broadcast %6 : vector<1x32xf32> to vector<2x32xf32>
    %315 = arith.addf %313, %314 : vector<2x32xf32>
    %316 = arith.mulf %303, %315 : vector<2x32xf32>
    %317 = arith.addf %312, %316 : vector<2x32xf32>
    %318 = math.tanh %317 : vector<2x32xf32>
    %319 = arith.subf %294, %318 : vector<2x32xf32>
    %320 = arith.mulf %311, %319 : vector<2x32xf32>
    %321 = arith.addf %318, %320 : vector<2x32xf32>
    %c0_121 = arith.constant 0 : index
    %c0_122 = arith.constant 0 : index
    %322 = vector.load %arg6[%c0_121, %c0_122] : memref<2x32xf32, #tpu.memory_space<vmem>>, vector<2x32xf32>
    tpu.vector_store %arg6[%c0_121, %c0_122], %321 {strides = array<i32>} : memref<2x32xf32, #tpu.memory_space<vmem>>, vector<2x32xf32>,
    %c0_123 = arith.constant 0 : index
    %323 = arith.index_cast %290 : i32 to index
    %c0_124 = arith.constant 0 : index
    %c0_125 = arith.constant 0 : index
    %324 = vector.load %arg5[%c0_123, %323, %c0_124, %c0_125] : memref<1x8x2x32xf32, #tpu.memory_space<vmem>>, vector<1x1x2x32xf32>
    %325 = vector.shape_cast %324 : vector<1x1x2x32xf32> to vector<2x32xf32>
    %326 = vector.shape_cast %321 : vector<2x32xf32> to vector<1x1x2x32xf32>
    tpu.vector_store %arg5[%c0_123, %323, %c0_124, %c0_125], %326 {strides = array<i32>} : memref<1x8x2x32xf32, #tpu.memory_space<vmem>>, vector<1x1x2x32xf32>,
    %c8_i32 = arith.constant 8 : i32
    return
  }
  func.func @transform_0(%arg0: i32, %arg1: i32) -> (i32, i32, i32, i32) {
    %c2_i32 = arith.constant 2 : i32
    %0 = arith.muli %c2_i32, %arg1 : i32
    %c0_i32 = arith.constant 0 : i32
    %1 = arith.subi %c0_i32, %0 : i32
    %2 = arith.muli %arg0, %1 : i32
    %3 = arith.addi %arg1, %2 : i32
    %c0_i32_0 = arith.constant 0 : i32
    %c0_i32_1 = arith.constant 0 : i32
    %c0_i32_2 = arith.constant 0 : i32
    return %arg0, %3, %c0_i32_0, %c0_i32_1 : i32, i32, i32, i32
  }
  func.func @transform_1(%arg0: i32, %arg1: i32) -> (i32, i32, i32) {
    %c0_i32 = arith.constant 0 : i32
    %c0_i32_0 = arith.constant 0 : i32
    %c0_i32_1 = arith.constant 0 : i32
    return %arg0, %c0_i32, %c0_i32_0 : i32, i32, i32
  }
  func.func @transform_2(%arg0: i32, %arg1: i32) -> (i32, i32, i32) {
    %c0_i32 = arith.constant 0 : i32
    %c0_i32_0 = arith.constant 0 : i32
    %c0_i32_1 = arith.constant 0 : i32
    return %arg0, %c0_i32, %c0_i32_0 : i32, i32, i32
  }
  func.func @transform_3(%arg0: i32, %arg1: i32) -> (i32, i32, i32, i32) {
    %c2_i32 = arith.constant 2 : i32
    %0 = arith.muli %c2_i32, %arg1 : i32
    %c0_i32 = arith.constant 0 : i32
    %1 = arith.subi %c0_i32, %0 : i32
    %2 = arith.muli %arg0, %1 : i32
    %3 = arith.addi %arg1, %2 : i32
    %c0_i32_0 = arith.constant 0 : i32
    %c0_i32_1 = arith.constant 0 : i32
    %c0_i32_2 = arith.constant 0 : i32
    return %arg0, %3, %c0_i32_0, %c0_i32_1 : i32, i32, i32, i32
  }
}

</mosaic_0001>

<llo_original>
// kernel: tpu_custom_call.1
$region0: #{tpu_custom_call.1}
  #allocation0 [shape = 'u32[]', space=smem, size = 0x4, offset = 0x4, fixed_abs, tag = 'smem constant byte address 0x4 - core index']
  #allocation1 [shape = 'u32[144,128]{1,0:T(1,128)}', space=vmem, size = 0x12000, scoped, tag = 'internal scratch']
  #allocation2 [shape = 'f32[2,32]{1,0:T(2,128)}', space=vmem, size = 0x400, scoped, tag = 'scratch operand']
  %s0 = inlined_call_operand.hbm [shape: f32[2,8,2,96], index: 0, kind: input, shape index: {}]
  %s1 = inlined_call_operand.hbm [shape: f32[2,32,96], index: 1, kind: input, shape index: {}]
  %s2 = inlined_call_operand.vmem [shape: f32[2,1,32], index: 2, kind: input, shape index: {}]
  %s3 = inlined_call_operand.hbm [shape: f32[2,8,2,32], index: 3, kind: output, shape index: {}]
  %s4 = sld [smem:[#allocation0]]
  $region57: #{tpu_custom_call.1} parent=0
    _
  %s6 = ssub.s32 1, %s4
  %s7 = scalar_select 0, %s6, %s4
  $region1: #{tpu_custom_call.1} parent=0
    #allocation3 [shape = 'u8[16384]{0}', space=vmem, size = 0x4000, scoped, tag = 'input window, operand 0']
    #allocation4 [shape = 's32[2]{0}', space=sflag, size = 0x8, scoped, tag = 'scoped memory for tpu_custom_call.1']
    #allocation5 [shape = 's32[2]{0}', space=sflag, size = 0x8, scoped, tag = 'scoped memory for tpu_custom_call.1']
    #allocation6 [shape = 'u8[32768]{0}', space=vmem, size = 0x8000, scoped, tag = 'input window, operand 1']
    #allocation7 [shape = 's32[2]{0}', space=sflag, size = 0x8, scoped, tag = 'scoped memory for tpu_custom_call.1']
    #allocation8 [shape = 'u8[16384]{0}', space=vmem, size = 0x4000, scoped, tag = 'output window, operand 0']
    %8 = vsyncpa [#allocation4], 0
    %s9 = scalar_lea.sflag [#allocation4], 1
    %10 = vsyncpa %s9, 0
    %11 = vsyncpa [#allocation7], 0
    %s12 = scalar_lea.sflag [#allocation7], 1
    %13 = vsyncpa %s12, 0
    %14 = vsyncpa [#allocation5], 0
    %s15 = scalar_lea.sflag [#allocation5], 1
    %16 = vsyncpa %s15, 0
    loop: start=0, step=1, limit=4
    $region2: #{tpu_custom_call.1} parent=1 // loop_pre_header
      _
    $region3: #{tpu_custom_call.1} parent=1 // loop_header
      %s18 = sphi 0, %s22
      %p19 = scmp.ge.s32.totalorder %s18, 4
      %s25 = sphi 0, %s37
      %s26 = sphi 0, %s33
      %s27 = sphi 0, %s25
      %s28 = sphi 0, %s26
      %s29 = sphi 0, %s27
      %s30 = sphi 0, %s28
      %s50 = sphi 0, %s52
      %s53 = sphi 0, %s50
      %s54 = sphi 0, %s53
      %s70 = sphi 0, %s54
      %s76 = sphi 0, %s78
      %s79 = sphi 0, %s76
      %s80 = sphi 0, %s79
      %s96 = sphi 0, %s80
      %s102 = sphi 0, %s104
      %s105 = sphi 0, %s102
      %s106 = sphi 0, %s105
      %s122 = sphi 0, %s106
      %s138 = sphi 0, %s140
      %s141 = sphi 0, %s138
      %s142 = sphi 0, %s141
      %s158 = sphi 0, %s142
    $region4: #{tpu_custom_call.1} parent=1 // loop_header_branch
      %21 = sbr.rel (%p19) target = $region8
    $region5: #{tpu_custom_call.1} parent=1 // loop_body
      %s23 = ssub.s32 %s18, 1
      %s24 = ssub.s32 %s18, 2
      %s31 = sadd.s32 1, %s26
      %p32 = scmp.ge.s32.totalorder %s31, 1
      %s33 = scalar_select %p32, 0, %s31
      %s34 = sadd.s32 1, %s25
      %s35 = scalar_select %p32, %s34, %s25
      %p36 = scmp.ge.s32.totalorder %s35, 2
      %s37 = scalar_select %p36, 0, %s35
      %s38 = smul.u32 %s26, 2
      %s39 = ssub.s32 0, %s38
      %s40 = smul.u32 %s25, %s39
      %s41 = sadd.s32 %s26, %s40
      %s42 = smul.u32 %s33, 2
      %s43 = ssub.s32 0, %s42
      %s44 = smul.u32 %s37, %s43
      %s45 = sadd.s32 %s33, %s44
      %s46 = ssub.s32 %s25, %s37
      %s47 = ssub.s32 %s41, %s45
      %s48 = sor.u32 %s46, %s47
      %p49 = scmp.eq.s32.totalorder %s48, 0
      %s51 = sadd.s32 %s50, 1
      %s52 = scalar_select %p49, %s50, %s51
      %p55 = pneg %p49
      %p56 = scmp.eq.s32.totalorder %s18, 1
      %p57 = por %p55, %p56
      %p58 = scmp.ne.s32.totalorder %s50, %s53
      %p59 = scmp.eq.s32.totalorder %s18, 0
      %p60 = por %p58, %p59
      %p61 = scmp.ne.s32.totalorder %s50, %s53
      %p62 = scmp.eq.s32.totalorder %s23, 1
      %p63 = por %p61, %p62
      %p64 = scmp.ne.s32.totalorder %s53, %s54
      %p65 = scmp.eq.s32.totalorder %s23, 0
      %p66 = por %p64, %p65
      %p67 = scmp.ne.s32.totalorder %s53, %s54
      %p68 = scmp.eq.s32.totalorder %s24, 1
      %p69 = por %p67, %p68
      %p71 = scmp.ne.s32.totalorder %s54, %s70
      %p72 = scmp.eq.s32.totalorder %s24, 0
      %p73 = por %p71, %p72
      %s74 = ssub.s32 %s25, %s37
      %p75 = scmp.eq.s32.totalorder %s74, 0
      %s77 = sadd.s32 %s76, 1
      %s78 = scalar_select %p75, %s76, %s77
      %p81 = pneg %p75
      %p82 = scmp.eq.s32.totalorder %s18, 1
      %p83 = por %p81, %p82
      %p84 = scmp.ne.s32.totalorder %s76, %s79
      %p85 = scmp.eq.s32.totalorder %s18, 0
      %p86 = por %p84, %p85
      %p87 = scmp.ne.s32.totalorder %s76, %s79
      %p88 = scmp.eq.s32.totalorder %s23, 1
      %p89 = por %p87, %p88
      %p90 = scmp.ne.s32.totalorder %s79, %s80
      %p91 = scmp.eq.s32.totalorder %s23, 0
      %p92 = por %p90, %p91
      %p93 = scmp.ne.s32.totalorder %s79, %s80
      %p94 = scmp.eq.s32.totalorder %s24, 1
      %p95 = por %p93, %p94
      %p97 = scmp.ne.s32.totalorder %s80, %s96
      %p98 = scmp.eq.s32.totalorder %s24, 0
      %p99 = por %p97, %p98
      %s100 = ssub.s32 %s25, %s37
      %p101 = scmp.eq.s32.totalorder %s100, 0
      %s103 = sadd.s32 %s102, 1
      %s104 = scalar_select %p101, %s102, %s103
      %p107 = pneg %p101
      %p108 = scmp.eq.s32.totalorder %s18, 1
      %p109 = por %p107, %p108
      %p110 = scmp.ne.s32.totalorder %s102, %s105
      %p111 = scmp.eq.s32.totalorder %s18, 0
      %p112 = por %p110, %p111
      %p113 = scmp.ne.s32.totalorder %s102, %s105
      %p114 = scmp.eq.s32.totalorder %s23, 1
      %p115 = por %p113, %p114
      %p116 = scmp.ne.s32.totalorder %s105, %s106
      %p117 = scmp.eq.s32.totalorder %s23, 0
      %p118 = por %p116, %p117
      %p119 = scmp.ne.s32.totalorder %s105, %s106
      %p120 = scmp.eq.s32.totalorder %s24, 1
      %p121 = por %p119, %p120
      %p123 = scmp.ne.s32.totalorder %s106, %s122
      %p124 = scmp.eq.s32.totalorder %s24, 0
      %p125 = por %p123, %p124
      %s126 = smul.u32 %s26, 2
      %s127 = ssub.s32 0, %s126
      %s128 = smul.u32 %s25, %s127
      %s129 = sadd.s32 %s26, %s128
      %s130 = smul.u32 %s33, 2
      %s131 = ssub.s32 0, %s130
      %s132 = smul.u32 %s37, %s131
      %s133 = sadd.s32 %s33, %s132
      %s134 = ssub.s32 %s25, %s37
      %s135 = ssub.s32 %s129, %s133
      %s136 = sor.u32 %s134, %s135
      %p137 = scmp.eq.s32.totalorder %s136, 0
      %s139 = sadd.s32 %s138, 1
      %s140 = scalar_select %p137, %s138, %s139
      %p143 = pneg %p137
      %p144 = scmp.eq.s32.totalorder %s18, 1
      %p145 = por %p143, %p144
      %p146 = scmp.ne.s32.totalorder %s138, %s141
      %p147 = scmp.eq.s32.totalorder %s18, 0
      %p148 = por %p146, %p147
      %p149 = scmp.ne.s32.totalorder %s138, %s141
      %p150 = scmp.eq.s32.totalorder %s23, 1
      %p151 = por %p149, %p150
      %p152 = scmp.ne.s32.totalorder %s141, %s142
      %p153 = scmp.eq.s32.totalorder %s23, 0
      %p154 = por %p152, %p153
      %p155 = scmp.ne.s32.totalorder %s141, %s142
      %p156 = scmp.eq.s32.totalorder %s24, 1
      %p157 = por %p155, %p156
      %p159 = scmp.ne.s32.totalorder %s142, %s158
      %p160 = scmp.eq.s32.totalorder %s24, 0
      %p161 = por %p159, %p160
      %p162 = scmp.le.s32.totalorder 1, %s18
      %p163 = scmp.lt.s32.totalorder %s18, 3
      %p164 = pnand %p162, %p163
      %p165 = pneg %p164
      // Predicated region
      $region9: #{tpu_custom_call.1} parent=5 // pred_check
        _
      $region10: #{tpu_custom_call.1} parent=5 // pred_check_branch
        %167 = sbr.rel (%p164) target = $region12
      $region11: #{tpu_custom_call.1} parent=5 // pred_region
        %s168 = ssub.s32 %s18, 1
      $region12: #{tpu_custom_call.1} parent=5 // pred_fallthru
        _
      %p169 = scmp.lt.s32.totalorder %s18, 2
      // Predicated region
      $region13: #{tpu_custom_call.1} parent=5 // pred_check
        %p170 = pneg %p169
      $region14: #{tpu_custom_call.1} parent=5 // pred_check_branch
        %172 = sbr.rel (%p170) target = $region16
      $region15: #{tpu_custom_call.1} parent=5 // pred_region
        // Predicated region
        $region17: #{tpu_custom_call.1} parent=15 // pred_check
          %p173 = pneg %p60
        $region18: #{tpu_custom_call.1} parent=15 // pred_check_branch
          %175 = sbr.rel (%p173) target = $region20
        $region19: #{tpu_custom_call.1} parent=15 // pred_region
          %s176 = sand.u32 %s50, 1
          %s177 = scalar_lea.sflag [#allocation4], %s176
          %s178 = sand.u32 %s50, 1
          %s179 = smul.addr %s178, 16
          %s180 = scalar_lea.vmem [#allocation3], %s179
          %s181 = smul.u32 %s26, 2
          %s182 = ssub.s32 0, %s181
          %s183 = smul.u32 %s25, %s182
          %s184 = sadd.s32 %s26, %s183
          %s185 = smul.u32 8, %s184
          %s187 = ssub.s32 256, 256
          %188 = vsyncadd %s177, %s187
          %s189 = smul.addr %s25, 8
          %s190 = sadd.s32 %s185, %s189
          %s191 = smul.addr %s190, 32
          %s192 = scalar_lea.hbm %s0, %s191
          %s193 = sshll.u32 %s180, 4
          %s194 = int_to_ptr.vmem [resolvable:$true] %s193
          %199 = dma.hbm_to_vmem [thread:$0]  %s192, 256, %s194, %s177, 32, 32, 2
        $region20: #{tpu_custom_call.1} parent=15 // pred_fallthru
          _
        // Predicated region
        $region21: #{tpu_custom_call.1} parent=15 // pred_check
          %p200 = pneg %p86
        $region22: #{tpu_custom_call.1} parent=15 // pred_check_branch
          %202 = sbr.rel (%p200) target = $region24
        $region23: #{tpu_custom_call.1} parent=15 // pred_region
          %s203 = sand.u32 %s76, 1
          %s204 = scalar_lea.sflag [#allocation7], %s203
          %s205 = sand.u32 %s76, 1
          %s206 = smul.addr %s205, 32
          %s207 = scalar_lea.vmem [#allocation6], %s206
          %s209 = ssub.s32 512, 512
          %210 = vsyncadd %s204, %s209
          %s211 = smul.addr %s25, 4
          %s212 = smul.addr %s211, 128
          %s213 = scalar_lea.hbm %s1, %s212
          %s214 = sshll.u32 %s207, 4
          %s215 = int_to_ptr.vmem [resolvable:$true] %s214
          %220 = dma.hbm_to_vmem [thread:$0]  %s213, 512, %s215, %s204, 128, 128, 8
        $region24: #{tpu_custom_call.1} parent=15 // pred_fallthru
          _
        // Predicated region
        $region25: #{tpu_custom_call.1} parent=15 // pred_check
          %p221 = pneg %p112
        $region26: #{tpu_custom_call.1} parent=15 // pred_check_branch
          %223 = sbr.rel (%p221) target = $region28
        $region27: #{tpu_custom_call.1} parent=15 // pred_region
          %p224 = scmp.lt.s32.totalorder %s25, 1
          %s225 = scalar_select %p224, %s25, 1
          %s226 = scalar_lea.vmem %s2, %s225
        $region28: #{tpu_custom_call.1} parent=15 // pred_fallthru
          _
      $region16: #{tpu_custom_call.1} parent=5 // pred_fallthru
        _
      %p227 = scmp.le.s32.totalorder 1, %s18
      %p228 = scmp.lt.s32.totalorder %s18, 3
      %p229 = pnand %p227, %p228
      %p230 = pneg %p229
      // Predicated region
      $region29: #{tpu_custom_call.1} parent=5 // pred_check
        _
      $region30: #{tpu_custom_call.1} parent=5 // pred_check_branch
        %232 = sbr.rel (%p229) target = $region32
      $region31: #{tpu_custom_call.1} parent=5 // pred_region
        %s233 = ssub.s32 %s18, 1
        %s234 = sand.u32 %s53, 1
        %s235 = scalar_lea.sflag [#allocation4], %s234
        %s236 = sand.u32 %s53, 1
        %s237 = smul.addr %s236, 16
        %s238 = scalar_lea.vmem [#allocation3], %s237
        // Predicated region
        $region33: #{tpu_custom_call.1} parent=31 // pred_check
          %p239 = pneg %p66
        $region34: #{tpu_custom_call.1} parent=31 // pred_check_branch
          %241 = sbr.rel (%p239) target = $region36
        $region35: #{tpu_custom_call.1} parent=31 // pred_region
          %242 = dma.done %s235, 256
        $region36: #{tpu_custom_call.1} parent=31 // pred_fallthru
          _
        %s243 = sand.u32 %s79, 1
        %s244 = scalar_lea.sflag [#allocation7], %s243
        %s245 = sand.u32 %s79, 1
        %s246 = smul.addr %s245, 32
        %s247 = scalar_lea.vmem [#allocation6], %s246
        // Predicated region
        $region37: #{tpu_custom_call.1} parent=31 // pred_check
          %p248 = pneg %p92
        $region38: #{tpu_custom_call.1} parent=31 // pred_check_branch
          %250 = sbr.rel (%p248) target = $region40
        $region39: #{tpu_custom_call.1} parent=31 // pred_region
          %251 = dma.done %s244, 512
        $region40: #{tpu_custom_call.1} parent=31 // pred_fallthru
          _
        %s252 = sand.u32 %s53, 1
        %s253 = scalar_lea.sflag [#allocation4], %s252
        %s254 = sand.u32 %s53, 1
        %s255 = smul.addr %s254, 16
        %s256 = scalar_lea.vmem [#allocation3], %s255
        %p257 = pneg %p66
        %p258 = pneg %p63
        %s259 = sand.u32 %s79, 1
        %s260 = scalar_lea.sflag [#allocation7], %s259
        %s261 = sand.u32 %s79, 1
        %s262 = smul.addr %s261, 32
        %s263 = scalar_lea.vmem [#allocation6], %s262
        %p264 = pneg %p92
        %p265 = pneg %p89
        %p266 = scmp.lt.s32.totalorder %s27, 1
        %s267 = scalar_select %p266, %s27, 1
        %s268 = scalar_lea.vmem %s2, %s267
        %p269 = pneg %p118
        %p270 = pneg %p115
        %p271 = pneg %p154
        %p272 = pneg %p151
        %s273 = sand.u32 %s141, 1
        %s274 = scalar_lea.sflag [#allocation5], %s273
        %s275 = sand.u32 %s141, 1
        %s276 = smul.addr %s275, 16
        %s277 = scalar_lea.vmem [#allocation8], %s276
        %s278 = smul.u32 %s28, 2
        %s279 = ssub.s32 0, %s278
        %s280 = smul.u32 %s27, %s279
        %s281 = sadd.s32 %s28, %s280
        %s282 = smul.u32 8, %s281
        %p283 = scmp.lt.s32.totalorder %s27, 1
        %s284 = scalar_select %p283, %s27, 1
        %s285 = scalar_lea.vmem %s2, %s284
        %s286 = smul.u32 %s28, 2
        %s287 = ssub.s32 0, %s286
        %s288 = smul.u32 %s27, %s287
        %s289 = sadd.s32 %s28, %s288
        %s290 = smul.u32 8, %s289
        %p291 = scmp.eq.s32.totalorder %s28, 0
        // Predicated region
        $region41: #{tpu_custom_call.1} parent=31 // pred_check
          %p292 = pneg %p291
        $region42: #{tpu_custom_call.1} parent=31 // pred_check_branch
          %294 = sbr.rel (%p292) target = $region44
        $region43: #{tpu_custom_call.1} parent=31 // pred_region
          %vm295 = vcmask 254976
          %296 = vst.msk [vmem:[#allocation2] sm:$0x3] %vm295, 0.0
        $region44: #{tpu_custom_call.1} parent=31 // pred_fallthru
          _
        %v297 = vld [vmem:[%s247] sm:$0xff]
        %v298 = vld [vmem:[%s247 + $0x8] sm:$0xff]
        %v299 = vld [vmem:[%s247 + $0x10] sm:$0xff]
        %v300 = vld [vmem:[%s247 + $0x18] sm:$0xff]
        %v301 = vld [vmem:[%s285] sm:$0x1]
        %s302 = smul.u32 %s27, 7
        %s303 = smul.u32 %s302, 2
        %s304 = scalar_lea.vmem %s238, %s303 [#allocation3]
        %v305 = vld [vmem:[%s304] sm:$0x3]
        %v306 = vld [vmem:[#allocation2] sm:$0x3]
        %vm307 = vcmask 261120
        %v309 = vsel %vm307, %v306, 0
        %311 = vmatprep.subr.mxu0 0.0
        %312 = vmatpush1.msra.mxu0 %v297
        %313 = vmatprep.subr.mxu0 0.0
        %314 = vmatpush1.msra.mxu0 %v298
        %315 = vmatprep.subr.mxu0 0.0
        %316 = vmatpush1.msra.mxu0 %v299
        %317 = vmatprep.subr.mxu0 0.0
        %318 = vmatpush1.msra.mxu0 %v300
        %319 = vmatprep.subr.mxu0 0.0
        %320 = vmatpush1.msra.mxu0 0.0
        %321 = vmatprep.subr.mxu0 0.0
        %322 = vmatpush1.msra.mxu0 0.0
        %323 = vmatprep.subr.mxu0 0.0
        %324 = vmatpush1.msra.mxu0 0.0
        %325 = vmatprep.subr.mxu0 0.0
        %326 = vmatpush1.msra.mxu0 0.0
        %327 = vmatprep.subr.mxu0 0.0
        %328 = vmatpush1.msra.mxu0 0.0
        %329 = vmatprep.subr.mxu0 0.0
        %330 = vmatpush1.msra.mxu0 0.0
        %331 = vmatprep.subr.mxu0 0.0
        %332 = vmatpush1.msra.mxu0 0.0
        %333 = vmatprep.subr.mxu0 0.0
        %334 = vmatpush1.msra.mxu0 0.0
        %335 = vmatprep.subr.mxu0 0.0
        %336 = vmatpush1.msra.mxu0 0.0
        %337 = vmatprep.subr.mxu0 0.0
        %338 = vmatpush1.msra.mxu0 0.0
        %339 = vmatprep.subr.mxu0 0.0
        %340 = vmatpush1.msra.mxu0 0.0
        %341 = vmatprep.subr.mxu0 0.0
        %342 = vmatpush1.msra.mxu0 0.0
        %343 = vmatprep.subr.mxu0 0.0
        %344 = vmatpush1.msra.mxu0 0.0
        %345 = vmatprep.subr.mxu0 0.0
        %346 = vmatpush1.msra.mxu0 0.0
        %347 = vmatprep.subr.mxu0 0.0
        %348 = vmatpush1.msra.mxu0 0.0
        %349 = vmatprep.subr.mxu0 0.0
        %350 = vmatpush1.msra.mxu0 0.0
        %351 = vmatprep.subr.mxu0 0.0
        %352 = vmatpush1.msra.mxu0 0.0
        %353 = vmatprep.subr.mxu0 0.0
        %354 = vmatpush1.msra.mxu0 0.0
        %355 = vmatprep.subr.mxu0 0.0
        %356 = vmatpush1.msra.mxu0 0.0
        %357 = vmatprep.subr.mxu0 0.0
        %358 = vmatpush1.msra.mxu0 0.0
        %359 = vmatprep.subr.mxu0 0.0
        %360 = vmatpush1.msra.mxu0 0.0
        %361 = vmatprep.subr.mxu0 0.0
        %362 = vmatpush1.msra.mxu0 0.0
        %363 = vmatprep.subr.mxu0 0.0
        %364 = vmatpush1.msra.mxu0 0.0
        %365 = vmatprep.subr.mxu0 0.0
        %366 = vmatpush1.msra.mxu0 0.0
        %367 = vmatprep.subr.mxu0 0.0
        %368 = vmatpush1.msra.mxu0 0.0
        %369 = vmatprep.subr.mxu0 0.0
        %370 = vmatpush1.msra.mxu0 0.0
        %371 = vmatprep.subr.mxu0 0.0
        %372 = vmatpush1.msra.mxu0 0.0
        %373 = vmatprep.subr.mxu0 0.0
        %374 = vmatpush1.msra.mxu0 0.0
        %375 = vmatprep.mubr.f32.mxu0 0.0
        %376 = vmatmul.mubr.f32.gmra.mrb[0].mxu0 %v309
        %v377 = vpop.f32.mrb[0].mxu0
        %v378 = vadd.f32 0.0, %v377
        %v379 = vpop.f32.mrb[0].mxu0
        %380 = vdwg.mxu0
        %v381 = vadd.f32 %v305, %v378
        %v382 = vxor.u32 %v381, 2147483648
        %v383 = vmul.f32 %v382, 1.442695
        %v384 = vpow.pop %v383
        %v385 = vadd.f32 %v384, 1.0
        %v386 = vrcp.pop %v385
        %v387 = vmul.f32 1.0, %v386
        %v389 = vlaneseq
        %v390 = vshrl.u32 %v389, 7
        %v391 = vsub.s32 0, %v390
        %v392 = vrot.slane %v301, %v391
        %393 = vrot.lane.b32.xlu0 %v392, 64
        %v394 = vpop.permute.xlu0 %393
        %v396 = vadd.f32 %v378, %v394
        %398 = vrot.lane.b32.xlu0 %v396, 64
        %v399 = vpop.permute.xlu0 %398
        %v401 = vmul.f32 %v387, %v399
        %403 = vrot.lane.b32.xlu0 %v401, 64
        %v404 = vpop.permute.xlu0 %403
        %v406 = vadd.f32 %v305, %v404
        %v407 = vtanh.pop %v406
        %409 = vrot.lane.b32.xlu0 %v407, 64
        %v410 = vpop.permute.xlu0 %409
        %v412 = vsub.f32 %v306, %v410
        %414 = vrot.lane.b32.xlu0 %v412, 32
        %v415 = vpop.permute.xlu0 %414
        %v417 = vmul.f32 %v387, %v415
        %419 = vrot.lane.b32.xlu0 %v417, 32
        %v420 = vpop.permute.xlu0 %419
        %v422 = vadd.f32 %v407, %v420
        %424 = vrot.lane.b32.xlu0 %v422, 64
        %v425 = vpop.permute.xlu0 %424
        %vm427 = vcmask 254976
        %428 = vst.msk [vmem:[#allocation2] sm:$0x3] %vm427, %v425
        %s429 = scalar_lea.vmem %s277, %s303 [#allocation8]
        %430 = vst.msk [vmem:[%s429] sm:$0x3] %vm427, %v425
        %s431 = smul.u32 %s27, 5
        %s432 = sadd.s32 %s431, 1
        %s433 = smul.u32 %s432, 2
        %s434 = scalar_lea.vmem %s238, %s433 [#allocation3]
        %v435 = vld [vmem:[%s434] sm:$0x3]
        %v436 = vld [vmem:[#allocation2] sm:$0x3]
        %v438 = vsel %vm307, %v436, 0
        %440 = vmatprep.subr.mxu0 0.0
        %441 = vmatpush1.msra.mxu0 %v297
        %442 = vmatprep.subr.mxu0 0.0
        %443 = vmatpush1.msra.mxu0 %v298
        %444 = vmatprep.subr.mxu0 0.0
        %445 = vmatpush1.msra.mxu0 %v299
        %446 = vmatprep.subr.mxu0 0.0
        %447 = vmatpush1.msra.mxu0 %v300
        %448 = vmatprep.subr.mxu0 0.0
        %449 = vmatpush1.msra.mxu0 0.0
        %450 = vmatprep.subr.mxu0 0.0
        %451 = vmatpush1.msra.mxu0 0.0
        %452 = vmatprep.subr.mxu0 0.0
        %453 = vmatpush1.msra.mxu0 0.0
        %454 = vmatprep.subr.mxu0 0.0
        %455 = vmatpush1.msra.mxu0 0.0
        %456 = vmatprep.subr.mxu0 0.0
        %457 = vmatpush1.msra.mxu0 0.0
        %458 = vmatprep.subr.mxu0 0.0
        %459 = vmatpush1.msra.mxu0 0.0
        %460 = vmatprep.subr.mxu0 0.0
        %461 = vmatpush1.msra.mxu0 0.0
        %462 = vmatprep.subr.mxu0 0.0
        %463 = vmatpush1.msra.mxu0 0.0
        %464 = vmatprep.subr.mxu0 0.0
        %465 = vmatpush1.msra.mxu0 0.0
        %466 = vmatprep.subr.mxu0 0.0
        %467 = vmatpush1.msra.mxu0 0.0
        %468 = vmatprep.subr.mxu0 0.0
        %469 = vmatpush1.msra.mxu0 0.0
        %470 = vmatprep.subr.mxu0 0.0
        %471 = vmatpush1.msra.mxu0 0.0
        %472 = vmatprep.subr.mxu0 0.0
        %473 = vmatpush1.msra.mxu0 0.0
        %474 = vmatprep.subr.mxu0 0.0
        %475 = vmatpush1.msra.mxu0 0.0
        %476 = vmatprep.subr.mxu0 0.0
        %477 = vmatpush1.msra.mxu0 0.0
        %478 = vmatprep.subr.mxu0 0.0
        %479 = vmatpush1.msra.mxu0 0.0
        %480 = vmatprep.subr.mxu0 0.0
        %481 = vmatpush1.msra.mxu0 0.0
        %482 = vmatprep.subr.mxu0 0.0
        %483 = vmatpush1.msra.mxu0 0.0
        %484 = vmatprep.subr.mxu0 0.0
        %485 = vmatpush1.msra.mxu0 0.0
        %486 = vmatprep.subr.mxu0 0.0
        %487 = vmatpush1.msra.mxu0 0.0
        %488 = vmatprep.subr.mxu0 0.0
        %489 = vmatpush1.msra.mxu0 0.0
        %490 = vmatprep.subr.mxu0 0.0
        %491 = vmatpush1.msra.mxu0 0.0
        %492 = vmatprep.subr.mxu0 0.0
        %493 = vmatpush1.msra.mxu0 0.0
        %494 = vmatprep.subr.mxu0 0.0
        %495 = vmatpush1.msra.mxu0 0.0
        %496 = vmatprep.subr.mxu0 0.0
        %497 = vmatpush1.msra.mxu0 0.0
        %498 = vmatprep.subr.mxu0 0.0
        %499 = vmatpush1.msra.mxu0 0.0
        %500 = vmatprep.subr.mxu0 0.0
        %501 = vmatpush1.msra.mxu0 0.0
        %502 = vmatprep.subr.mxu0 0.0
        %503 = vmatpush1.msra.mxu0 0.0
        %504 = vmatprep.mubr.f32.mxu0 0.0
        %505 = vmatmul.mubr.f32.gmra.mrb[0].mxu0 %v438
        %v506 = vpop.f32.mrb[0].mxu0
        %v507 = vadd.f32 0.0, %v506
        %v508 = vpop.f32.mrb[0].mxu0
        %509 = vdwg.mxu0
        %v510 = vadd.f32 %v435, %v507
        %v511 = vxor.u32 %v510, 2147483648
        %v512 = vmul.f32 %v511, 1.442695
        %v513 = vpow.pop %v512
        %v514 = vadd.f32 %v513, 1.0
        %v515 = vrcp.pop %v514
        %v516 = vmul.f32 1.0, %v515
        %v517 = vadd.f32 %v507, %v394
        %519 = vrot.lane.b32.xlu0 %v517, 64
        %v520 = vpop.permute.xlu0 %519
        %v522 = vmul.f32 %v516, %v520
        %524 = vrot.lane.b32.xlu0 %v522, 64
        %v525 = vpop.permute.xlu0 %524
        %v527 = vadd.f32 %v435, %v525
        %v528 = vtanh.pop %v527
        %530 = vrot.lane.b32.xlu0 %v528, 64
        %v531 = vpop.permute.xlu0 %530
        %v533 = vsub.f32 %v436, %v531
        %535 = vrot.lane.b32.xlu0 %v533, 32
        %v536 = vpop.permute.xlu0 %535
        %v538 = vmul.f32 %v516, %v536
        %540 = vrot.lane.b32.xlu0 %v538, 32
        %v541 = vpop.permute.xlu0 %540
        %v543 = vadd.f32 %v528, %v541
        %545 = vrot.lane.b32.xlu0 %v543, 64
        %v546 = vpop.permute.xlu0 %545
        %548 = vst.msk [vmem:[#allocation2] sm:$0x3] %vm427, %v546
        %s549 = scalar_lea.vmem %s277, %s433 [#allocation8]
        %550 = vst.msk [vmem:[%s549] sm:$0x3] %vm427, %v546
        %s551 = smul.u32 %s27, 3
        %s552 = sadd.s32 %s551, 2
        %s553 = smul.u32 %s552, 2
        %s554 = scalar_lea.vmem %s238, %s553 [#allocation3]
        %v555 = vld [vmem:[%s554] sm:$0x3]
        %v556 = vld [vmem:[#allocation2] sm:$0x3]
        %v558 = vsel %vm307, %v556, 0
        %560 = vmatprep.subr.mxu0 0.0
        %561 = vmatpush1.msra.mxu0 %v297
        %562 = vmatprep.subr.mxu0 0.0
        %563 = vmatpush1.msra.mxu0 %v298
        %564 = vmatprep.subr.mxu0 0.0
        %565 = vmatpush1.msra.mxu0 %v299
        %566 = vmatprep.subr.mxu0 0.0
        %567 = vmatpush1.msra.mxu0 %v300
        %568 = vmatprep.subr.mxu0 0.0
        %569 = vmatpush1.msra.mxu0 0.0
        %570 = vmatprep.subr.mxu0 0.0
        %571 = vmatpush1.msra.mxu0 0.0
        %572 = vmatprep.subr.mxu0 0.0
        %573 = vmatpush1.msra.mxu0 0.0
        %574 = vmatprep.subr.mxu0 0.0
        %575 = vmatpush1.msra.mxu0 0.0
        %576 = vmatprep.subr.mxu0 0.0
        %577 = vmatpush1.msra.mxu0 0.0
        %578 = vmatprep.subr.mxu0 0.0
        %579 = vmatpush1.msra.mxu0 0.0
        %580 = vmatprep.subr.mxu0 0.0
        %581 = vmatpush1.msra.mxu0 0.0
        %582 = vmatprep.subr.mxu0 0.0
        %583 = vmatpush1.msra.mxu0 0.0
        %584 = vmatprep.subr.mxu0 0.0
        %585 = vmatpush1.msra.mxu0 0.0
        %586 = vmatprep.subr.mxu0 0.0
        %587 = vmatpush1.msra.mxu0 0.0
        %588 = vmatprep.subr.mxu0 0.0
        %589 = vmatpush1.msra.mxu0 0.0
        %590 = vmatprep.subr.mxu0 0.0
        %591 = vmatpush1.msra.mxu0 0.0
        %592 = vmatprep.subr.mxu0 0.0
        %593 = vmatpush1.msra.mxu0 0.0
        %594 = vmatprep.subr.mxu0 0.0
        %595 = vmatpush1.msra.mxu0 0.0
        %596 = vmatprep.subr.mxu0 0.0
        %597 = vmatpush1.msra.mxu0 0.0
        %598 = vmatprep.subr.mxu0 0.0
        %599 = vmatpush1.msra.mxu0 0.0
        %600 = vmatprep.subr.mxu0 0.0
        %601 = vmatpush1.msra.mxu0 0.0
        %602 = vmatprep.subr.mxu0 0.0
        %603 = vmatpush1.msra.mxu0 0.0
        %604 = vmatprep.subr.mxu0 0.0
        %605 = vmatpush1.msra.mxu0 0.0
        %606 = vmatprep.subr.mxu0 0.0
        %607 = vmatpush1.msra.mxu0 0.0
        %608 = vmatprep.subr.mxu0 0.0
        %609 = vmatpush1.msra.mxu0 0.0
        %610 = vmatprep.subr.mxu0 0.0
        %611 = vmatpush1.msra.mxu0 0.0
        %612 = vmatprep.subr.mxu0 0.0
        %613 = vmatpush1.msra.mxu0 0.0
        %614 = vmatprep.subr.mxu0 0.0
        %615 = vmatpush1.msra.mxu0 0.0
        %616 = vmatprep.subr.mxu0 0.0
        %617 = vmatpush1.msra.mxu0 0.0
        %618 = vmatprep.subr.mxu0 0.0
        %619 = vmatpush1.msra.mxu0 0.0
        %620 = vmatprep.subr.mxu0 0.0
        %621 = vmatpush1.msra.mxu0 0.0
        %622 = vmatprep.subr.mxu0 0.0
        %623 = vmatpush1.msra.mxu0 0.0
        %624 = vmatprep.mubr.f32.mxu0 0.0
        %625 = vmatmul.mubr.f32.gmra.mrb[0].mxu0 %v558
        %v626 = vpop.f32.mrb[0].mxu0
        %v627 = vadd.f32 0.0, %v626
        %v628 = vpop.f32.mrb[0].mxu0
        %629 = vdwg.mxu0
        %v630 = vadd.f32 %v555, %v627
        %v631 = vxor.u32 %v630, 2147483648
        %v632 = vmul.f32 %v631, 1.442695
        %v633 = vpow.pop %v632
        %v634 = vadd.f32 %v633, 1.0
        %v635 = vrcp.pop %v634
        %v636 = vmul.f32 1.0, %v635
        %v637 = vadd.f32 %v627, %v394
        %639 = vrot.lane.b32.xlu0 %v637, 64
        %v640 = vpop.permute.xlu0 %639
        %v642 = vmul.f32 %v636, %v640
        %644 = vrot.lane.b32.xlu0 %v642, 64
        %v645 = vpop.permute.xlu0 %644
        %v647 = vadd.f32 %v555, %v645
        %v648 = vtanh.pop %v647
        %650 = vrot.lane.b32.xlu0 %v648, 64
        %v651 = vpop.permute.xlu0 %650
        %v653 = vsub.f32 %v556, %v651
        %655 = vrot.lane.b32.xlu0 %v653, 32
        %v656 = vpop.permute.xlu0 %655
        %v658 = vmul.f32 %v636, %v656
        %660 = vrot.lane.b32.xlu0 %v658, 32
        %v661 = vpop.permute.xlu0 %660
        %v663 = vadd.f32 %v648, %v661
        %665 = vrot.lane.b32.xlu0 %v663, 64
        %v666 = vpop.permute.xlu0 %665
        %668 = vst.msk [vmem:[#allocation2] sm:$0x3] %vm427, %v666
        %s669 = scalar_lea.vmem %s277, %s553 [#allocation8]
        %670 = vst.msk [vmem:[%s669] sm:$0x3] %vm427, %v666
        %s671 = sadd.s32 %s27, 3
        %s672 = smul.u32 %s671, 2
        %s673 = scalar_lea.vmem %s238, %s672 [#allocation3]
        %v674 = vld [vmem:[%s673] sm:$0x3]
        %v675 = vld [vmem:[#allocation2] sm:$0x3]
        %v677 = vsel %vm307, %v675, 0
        %679 = vmatprep.subr.mxu0 0.0
        %680 = vmatpush1.msra.mxu0 %v297
        %681 = vmatprep.subr.mxu0 0.0
        %682 = vmatpush1.msra.mxu0 %v298
        %683 = vmatprep.subr.mxu0 0.0
        %684 = vmatpush1.msra.mxu0 %v299
        %685 = vmatprep.subr.mxu0 0.0
        %686 = vmatpush1.msra.mxu0 %v300
        %687 = vmatprep.subr.mxu0 0.0
        %688 = vmatpush1.msra.mxu0 0.0
        %689 = vmatprep.subr.mxu0 0.0
        %690 = vmatpush1.msra.mxu0 0.0
        %691 = vmatprep.subr.mxu0 0.0
        %692 = vmatpush1.msra.mxu0 0.0
        %693 = vmatprep.subr.mxu0 0.0
        %694 = vmatpush1.msra.mxu0 0.0
        %695 = vmatprep.subr.mxu0 0.0
        %696 = vmatpush1.msra.mxu0 0.0
        %697 = vmatprep.subr.mxu0 0.0
        %698 = vmatpush1.msra.mxu0 0.0
        %699 = vmatprep.subr.mxu0 0.0
        %700 = vmatpush1.msra.mxu0 0.0
        %701 = vmatprep.subr.mxu0 0.0
        %702 = vmatpush1.msra.mxu0 0.0
        %703 = vmatprep.subr.mxu0 0.0
        %704 = vmatpush1.msra.mxu0 0.0
        %705 = vmatprep.subr.mxu0 0.0
        %706 = vmatpush1.msra.mxu0 0.0
        %707 = vmatprep.subr.mxu0 0.0
        %708 = vmatpush1.msra.mxu0 0.0
        %709 = vmatprep.subr.mxu0 0.0
        %710 = vmatpush1.msra.mxu0 0.0
        %711 = vmatprep.subr.mxu0 0.0
        %712 = vmatpush1.msra.mxu0 0.0
        %713 = vmatprep.subr.mxu0 0.0
        %714 = vmatpush1.msra.mxu0 0.0
        %715 = vmatprep.subr.mxu0 0.0
        %716 = vmatpush1.msra.mxu0 0.0
        %717 = vmatprep.subr.mxu0 0.0
        %718 = vmatpush1.msra.mxu0 0.0
        %719 = vmatprep.subr.mxu0 0.0
        %720 = vmatpush1.msra.mxu0 0.0
        %721 = vmatprep.subr.mxu0 0.0
        %722 = vmatpush1.msra.mxu0 0.0
        %723 = vmatprep.subr.mxu0 0.0
        %724 = vmatpush1.msra.mxu0 0.0
        %725 = vmatprep.subr.mxu0 0.0
        %726 = vmatpush1.msra.mxu0 0.0
        %727 = vmatprep.subr.mxu0 0.0
        %728 = vmatpush1.msra.mxu0 0.0
        %729 = vmatprep.subr.mxu0 0.0
        %730 = vmatpush1.msra.mxu0 0.0
        %731 = vmatprep.subr.mxu0 0.0
        %732 = vmatpush1.msra.mxu0 0.0
        %733 = vmatprep.subr.mxu0 0.0
        %734 = vmatpush1.msra.mxu0 0.0
        %735 = vmatprep.subr.mxu0 0.0
        %736 = vmatpush1.msra.mxu0 0.0
        %737 = vmatprep.subr.mxu0 0.0
        %738 = vmatpush1.msra.mxu0 0.0
        %739 = vmatprep.subr.mxu0 0.0
        %740 = vmatpush1.msra.mxu0 0.0
        %741 = vmatprep.subr.mxu0 0.0
        %742 = vmatpush1.msra.mxu0 0.0
        %743 = vmatprep.mubr.f32.mxu0 0.0
        %744 = vmatmul.mubr.f32.gmra.mrb[0].mxu0 %v677
        %v745 = vpop.f32.mrb[0].mxu0
        %v746 = vadd.f32 0.0, %v745
        %v747 = vpop.f32.mrb[0].mxu0
        %748 = vdwg.mxu0
        %v749 = vadd.f32 %v674, %v746
        %v750 = vxor.u32 %v749, 2147483648
        %v751 = vmul.f32 %v750, 1.442695
        %v752 = vpow.pop %v751
        %v753 = vadd.f32 %v752, 1.0
        %v754 = vrcp.pop %v753
        %v755 = vmul.f32 1.0, %v754
        %v756 = vadd.f32 %v746, %v394
        %758 = vrot.lane.b32.xlu0 %v756, 64
        %v759 = vpop.permute.xlu0 %758
        %v761 = vmul.f32 %v755, %v759
        %763 = vrot.lane.b32.xlu0 %v761, 64
        %v764 = vpop.permute.xlu0 %763
        %v766 = vadd.f32 %v674, %v764
        %v767 = vtanh.pop %v766
        %769 = vrot.lane.b32.xlu0 %v767, 64
        %v770 = vpop.permute.xlu0 %769
        %v772 = vsub.f32 %v675, %v770
        %774 = vrot.lane.b32.xlu0 %v772, 32
        %v775 = vpop.permute.xlu0 %774
        %v777 = vmul.f32 %v755, %v775
        %779 = vrot.lane.b32.xlu0 %v777, 32
        %v780 = vpop.permute.xlu0 %779
        %v782 = vadd.f32 %v767, %v780
        %784 = vrot.lane.b32.xlu0 %v782, 64
        %v785 = vpop.permute.xlu0 %784
        %787 = vst.msk [vmem:[#allocation2] sm:$0x3] %vm427, %v785
        %s788 = scalar_lea.vmem %s277, %s672 [#allocation8]
        %789 = vst.msk [vmem:[%s788] sm:$0x3] %vm427, %v785
        %s790 = ssub.s32 4, %s27
        %s791 = smul.u32 %s790, 2
        %s792 = scalar_lea.vmem %s238, %s791 [#allocation3]
        %v793 = vld [vmem:[%s792] sm:$0x3]
        %v794 = vld [vmem:[#allocation2] sm:$0x3]
        %v796 = vsel %vm307, %v794, 0
        %798 = vmatprep.subr.mxu0 0.0
        %799 = vmatpush1.msra.mxu0 %v297
        %800 = vmatprep.subr.mxu0 0.0
        %801 = vmatpush1.msra.mxu0 %v298
        %802 = vmatprep.subr.mxu0 0.0
        %803 = vmatpush1.msra.mxu0 %v299
        %804 = vmatprep.subr.mxu0 0.0
        %805 = vmatpush1.msra.mxu0 %v300
        %806 = vmatprep.subr.mxu0 0.0
        %807 = vmatpush1.msra.mxu0 0.0
        %808 = vmatprep.subr.mxu0 0.0
        %809 = vmatpush1.msra.mxu0 0.0
        %810 = vmatprep.subr.mxu0 0.0
        %811 = vmatpush1.msra.mxu0 0.0
        %812 = vmatprep.subr.mxu0 0.0
        %813 = vmatpush1.msra.mxu0 0.0
        %814 = vmatprep.subr.mxu0 0.0
        %815 = vmatpush1.msra.mxu0 0.0
        %816 = vmatprep.subr.mxu0 0.0
        %817 = vmatpush1.msra.mxu0 0.0
        %818 = vmatprep.subr.mxu0 0.0
        %819 = vmatpush1.msra.mxu0 0.0
        %820 = vmatprep.subr.mxu0 0.0
        %821 = vmatpush1.msra.mxu0 0.0
        %822 = vmatprep.subr.mxu0 0.0
        %823 = vmatpush1.msra.mxu0 0.0
        %824 = vmatprep.subr.mxu0 0.0
        %825 = vmatpush1.msra.mxu0 0.0
        %826 = vmatprep.subr.mxu0 0.0
        %827 = vmatpush1.msra.mxu0 0.0
        %828 = vmatprep.subr.mxu0 0.0
        %829 = vmatpush1.msra.mxu0 0.0
        %830 = vmatprep.subr.mxu0 0.0
        %831 = vmatpush1.msra.mxu0 0.0
        %832 = vmatprep.subr.mxu0 0.0
        %833 = vmatpush1.msra.mxu0 0.0
        %834 = vmatprep.subr.mxu0 0.0
        %835 = vmatpush1.msra.mxu0 0.0
        %836 = vmatprep.subr.mxu0 0.0
        %837 = vmatpush1.msra.mxu0 0.0
        %838 = vmatprep.subr.mxu0 0.0
        %839 = vmatpush1.msra.mxu0 0.0
        %840 = vmatprep.subr.mxu0 0.0
        %841 = vmatpush1.msra.mxu0 0.0
        %842 = vmatprep.subr.mxu0 0.0
        %843 = vmatpush1.msra.mxu0 0.0
        %844 = vmatprep.subr.mxu0 0.0
        %845 = vmatpush1.msra.mxu0 0.0
        %846 = vmatprep.subr.mxu0 0.0
        %847 = vmatpush1.msra.mxu0 0.0
        %848 = vmatprep.subr.mxu0 0.0
        %849 = vmatpush1.msra.mxu0 0.0
        %850 = vmatprep.subr.mxu0 0.0
        %851 = vmatpush1.msra.mxu0 0.0
        %852 = vmatprep.subr.mxu0 0.0
        %853 = vmatpush1.msra.mxu0 0.0
        %854 = vmatprep.subr.mxu0 0.0
        %855 = vmatpush1.msra.mxu0 0.0
        %856 = vmatprep.subr.mxu0 0.0
        %857 = vmatpush1.msra.mxu0 0.0
        %858 = vmatprep.subr.mxu0 0.0
        %859 = vmatpush1.msra.mxu0 0.0
        %860 = vmatprep.subr.mxu0 0.0
        %861 = vmatpush1.msra.mxu0 0.0
        %862 = vmatprep.mubr.f32.mxu0 0.0
        %863 = vmatmul.mubr.f32.gmra.mrb[0].mxu0 %v796
        %v864 = vpop.f32.mrb[0].mxu0
        %v865 = vadd.f32 0.0, %v864
        %v866 = vpop.f32.mrb[0].mxu0
        %867 = vdwg.mxu0
        %v868 = vadd.f32 %v793, %v865
        %v869 = vxor.u32 %v868, 2147483648
        %v870 = vmul.f32 %v869, 1.442695
        %v871 = vpow.pop %v870
        %v872 = vadd.f32 %v871, 1.0
        %v873 = vrcp.pop %v872
        %v874 = vmul.f32 1.0, %v873
        %v875 = vadd.f32 %v865, %v394
        %877 = vrot.lane.b32.xlu0 %v875, 64
        %v878 = vpop.permute.xlu0 %877
        %v880 = vmul.f32 %v874, %v878
        %882 = vrot.lane.b32.xlu0 %v880, 64
        %v883 = vpop.permute.xlu0 %882
        %v885 = vadd.f32 %v793, %v883
        %v886 = vtanh.pop %v885
        %888 = vrot.lane.b32.xlu0 %v886, 64
        %v889 = vpop.permute.xlu0 %888
        %v891 = vsub.f32 %v794, %v889
        %893 = vrot.lane.b32.xlu0 %v891, 32
        %v894 = vpop.permute.xlu0 %893
        %v896 = vmul.f32 %v874, %v894
        %898 = vrot.lane.b32.xlu0 %v896, 32
        %v899 = vpop.permute.xlu0 %898
        %v901 = vadd.f32 %v886, %v899
        %903 = vrot.lane.b32.xlu0 %v901, 64
        %v904 = vpop.permute.xlu0 %903
        %906 = vst.msk [vmem:[#allocation2] sm:$0x3] %vm427, %v904
        %s907 = scalar_lea.vmem %s277, %s791 [#allocation8]
        %908 = vst.msk [vmem:[%s907] sm:$0x3] %vm427, %v904
        %s909 = smul.u32 %s27, 4294967293
        %s910 = sadd.s32 %s909, 5
        %s911 = smul.u32 %s910, 2
        %s912 = scalar_lea.vmem %s238, %s911 [#allocation3]
        %v913 = vld [vmem:[%s912] sm:$0x3]
        %v914 = vld [vmem:[#allocation2] sm:$0x3]
        %v916 = vsel %vm307, %v914, 0
        %918 = vmatprep.subr.mxu0 0.0
        %919 = vmatpush1.msra.mxu0 %v297
        %920 = vmatprep.subr.mxu0 0.0
        %921 = vmatpush1.msra.mxu0 %v298
        %922 = vmatprep.subr.mxu0 0.0
        %923 = vmatpush1.msra.mxu0 %v299
        %924 = vmatprep.subr.mxu0 0.0
        %925 = vmatpush1.msra.mxu0 %v300
        %926 = vmatprep.subr.mxu0 0.0
        %927 = vmatpush1.msra.mxu0 0.0
        %928 = vmatprep.subr.mxu0 0.0
        %929 = vmatpush1.msra.mxu0 0.0
        %930 = vmatprep.subr.mxu0 0.0
        %931 = vmatpush1.msra.mxu0 0.0
        %932 = vmatprep.subr.mxu0 0.0
        %933 = vmatpush1.msra.mxu0 0.0
        %934 = vmatprep.subr.mxu0 0.0
        %935 = vmatpush1.msra.mxu0 0.0
        %936 = vmatprep.subr.mxu0 0.0
        %937 = vmatpush1.msra.mxu0 0.0
        %938 = vmatprep.subr.mxu0 0.0
        %939 = vmatpush1.msra.mxu0 0.0
        %940 = vmatprep.subr.mxu0 0.0
        %941 = vmatpush1.msra.mxu0 0.0
        %942 = vmatprep.subr.mxu0 0.0
        %943 = vmatpush1.msra.mxu0 0.0
        %944 = vmatprep.subr.mxu0 0.0
        %945 = vmatpush1.msra.mxu0 0.0
        %946 = vmatprep.subr.mxu0 0.0
        %947 = vmatpush1.msra.mxu0 0.0
        %948 = vmatprep.subr.mxu0 0.0
        %949 = vmatpush1.msra.mxu0 0.0
        %950 = vmatprep.subr.mxu0 0.0
        %951 = vmatpush1.msra.mxu0 0.0
        %952 = vmatprep.subr.mxu0 0.0
        %953 = vmatpush1.msra.mxu0 0.0
        %954 = vmatprep.subr.mxu0 0.0
        %955 = vmatpush1.msra.mxu0 0.0
        %956 = vmatprep.subr.mxu0 0.0
        %957 = vmatpush1.msra.mxu0 0.0
        %958 = vmatprep.subr.mxu0 0.0
        %959 = vmatpush1.msra.mxu0 0.0
        %960 = vmatprep.subr.mxu0 0.0
        %961 = vmatpush1.msra.mxu0 0.0
        %962 = vmatprep.subr.mxu0 0.0
        %963 = vmatpush1.msra.mxu0 0.0
        %964 = vmatprep.subr.mxu0 0.0
        %965 = vmatpush1.msra.mxu0 0.0
        %966 = vmatprep.subr.mxu0 0.0
        %967 = vmatpush1.msra.mxu0 0.0
        %968 = vmatprep.subr.mxu0 0.0
        %969 = vmatpush1.msra.mxu0 0.0
        %970 = vmatprep.subr.mxu0 0.0
        %971 = vmatpush1.msra.mxu0 0.0
        %972 = vmatprep.subr.mxu0 0.0
        %973 = vmatpush1.msra.mxu0 0.0
        %974 = vmatprep.subr.mxu0 0.0
        %975 = vmatpush1.msra.mxu0 0.0
        %976 = vmatprep.subr.mxu0 0.0
        %977 = vmatpush1.msra.mxu0 0.0
        %978 = vmatprep.subr.mxu0 0.0
        %979 = vmatpush1.msra.mxu0 0.0
        %980 = vmatprep.subr.mxu0 0.0
        %981 = vmatpush1.msra.mxu0 0.0
        %982 = vmatprep.mubr.f32.mxu0 0.0
        %983 = vmatmul.mubr.f32.gmra.mrb[0].mxu0 %v916
        %v984 = vpop.f32.mrb[0].mxu0
        %v985 = vadd.f32 0.0, %v984
        %v986 = vpop.f32.mrb[0].mxu0
        %987 = vdwg.mxu0
        %v988 = vadd.f32 %v913, %v985
        %v989 = vxor.u32 %v988, 2147483648
        %v990 = vmul.f32 %v989, 1.442695
        %v991 = vpow.pop %v990
        %v992 = vadd.f32 %v991, 1.0
        %v993 = vrcp.pop %v992
        %v994 = vmul.f32 1.0, %v993
        %v995 = vadd.f32 %v985, %v394
        %997 = vrot.lane.b32.xlu0 %v995, 64
        %v998 = vpop.permute.xlu0 %997
        %v1000 = vmul.f32 %v994, %v998
        %1002 = vrot.lane.b32.xlu0 %v1000, 64
        %v1003 = vpop.permute.xlu0 %1002
        %v1005 = vadd.f32 %v913, %v1003
        %v1006 = vtanh.pop %v1005
        %1008 = vrot.lane.b32.xlu0 %v1006, 64
        %v1009 = vpop.permute.xlu0 %1008
        %v1011 = vsub.f32 %v914, %v1009
        %1013 = vrot.lane.b32.xlu0 %v1011, 32
        %v1014 = vpop.permute.xlu0 %1013
        %v1016 = vmul.f32 %v994, %v1014
        %1018 = vrot.lane.b32.xlu0 %v1016, 32
        %v1019 = vpop.permute.xlu0 %1018
        %v1021 = vadd.f32 %v1006, %v1019
        %1023 = vrot.lane.b32.xlu0 %v1021, 64
        %v1024 = vpop.permute.xlu0 %1023
        %1026 = vst.msk [vmem:[#allocation2] sm:$0x3] %vm427, %v1024
        %s1027 = scalar_lea.vmem %s277, %s911 [#allocation8]
        %1028 = vst.msk [vmem:[%s1027] sm:$0x3] %vm427, %v1024
        %s1029 = smul.u32 %s27, 4294967291
        %s1030 = sadd.s32 %s1029, 6
        %s1031 = smul.u32 %s1030, 2
        %s1032 = scalar_lea.vmem %s238, %s1031 [#allocation3]
        %v1033 = vld [vmem:[%s1032] sm:$0x3]
        %v1034 = vld [vmem:[#allocation2] sm:$0x3]
        %v1036 = vsel %vm307, %v1034, 0
        %1038 = vmatprep.subr.mxu0 0.0
        %1039 = vmatpush1.msra.mxu0 %v297
        %1040 = vmatprep.subr.mxu0 0.0
        %1041 = vmatpush1.msra.mxu0 %v298
        %1042 = vmatprep.subr.mxu0 0.0
        %1043 = vmatpush1.msra.mxu0 %v299
        %1044 = vmatprep.subr.mxu0 0.0
        %1045 = vmatpush1.msra.mxu0 %v300
        %1046 = vmatprep.subr.mxu0 0.0
        %1047 = vmatpush1.msra.mxu0 0.0
        %1048 = vmatprep.subr.mxu0 0.0
        %1049 = vmatpush1.msra.mxu0 0.0
        %1050 = vmatprep.subr.mxu0 0.0
        %1051 = vmatpush1.msra.mxu0 0.0
        %1052 = vmatprep.subr.mxu0 0.0
        %1053 = vmatpush1.msra.mxu0 0.0
        %1054 = vmatprep.subr.mxu0 0.0
        %1055 = vmatpush1.msra.mxu0 0.0
        %1056 = vmatprep.subr.mxu0 0.0
        %1057 = vmatpush1.msra.mxu0 0.0
        %1058 = vmatprep.subr.mxu0 0.0
        %1059 = vmatpush1.msra.mxu0 0.0
        %1060 = vmatprep.subr.mxu0 0.0
        %1061 = vmatpush1.msra.mxu0 0.0
        %1062 = vmatprep.subr.mxu0 0.0
        %1063 = vmatpush1.msra.mxu0 0.0
        %1064 = vmatprep.subr.mxu0 0.0
        %1065 = vmatpush1.msra.mxu0 0.0
        %1066 = vmatprep.subr.mxu0 0.0
        %1067 = vmatpush1.msra.mxu0 0.0
        %1068 = vmatprep.subr.mxu0 0.0
        %1069 = vmatpush1.msra.mxu0 0.0
        %1070 = vmatprep.subr.mxu0 0.0
        %1071 = vmatpush1.msra.mxu0 0.0
        %1072 = vmatprep.subr.mxu0 0.0
        %1073 = vmatpush1.msra.mxu0 0.0
        %1074 = vmatprep.subr.mxu0 0.0
        %1075 = vmatpush1.msra.mxu0 0.0
        %1076 = vmatprep.subr.mxu0 0.0
        %1077 = vmatpush1.msra.mxu0 0.0
        %1078 = vmatprep.subr.mxu0 0.0
        %1079 = vmatpush1.msra.mxu0 0.0
        %1080 = vmatprep.subr.mxu0 0.0
        %1081 = vmatpush1.msra.mxu0 0.0
        %1082 = vmatprep.subr.mxu0 0.0
        %1083 = vmatpush1.msra.mxu0 0.0
        %1084 = vmatprep.subr.mxu0 0.0
        %1085 = vmatpush1.msra.mxu0 0.0
        %1086 = vmatprep.subr.mxu0 0.0
        %1087 = vmatpush1.msra.mxu0 0.0
        %1088 = vmatprep.subr.mxu0 0.0
        %1089 = vmatpush1.msra.mxu0 0.0
        %1090 = vmatprep.subr.mxu0 0.0
        %1091 = vmatpush1.msra.mxu0 0.0
        %1092 = vmatprep.subr.mxu0 0.0
        %1093 = vmatpush1.msra.mxu0 0.0
        %1094 = vmatprep.subr.mxu0 0.0
        %1095 = vmatpush1.msra.mxu0 0.0
        %1096 = vmatprep.subr.mxu0 0.0
        %1097 = vmatpush1.msra.mxu0 0.0
        %1098 = vmatprep.subr.mxu0 0.0
        %1099 = vmatpush1.msra.mxu0 0.0
        %1100 = vmatprep.subr.mxu0 0.0
        %1101 = vmatpush1.msra.mxu0 0.0
        %1102 = vmatprep.mubr.f32.mxu0 0.0
        %1103 = vmatmul.mubr.f32.gmra.mrb[0].mxu0 %v1036
        %v1104 = vpop.f32.mrb[0].mxu0
        %v1105 = vadd.f32 0.0, %v1104
        %v1106 = vpop.f32.mrb[0].mxu0
        %1107 = vdwg.mxu0
        %v1108 = vadd.f32 %v1033, %v1105
        %v1109 = vxor.u32 %v1108, 2147483648
        %v1110 = vmul.f32 %v1109, 1.442695
        %v1111 = vpow.pop %v1110
        %v1112 = vadd.f32 %v1111, 1.0
        %v1113 = vrcp.pop %v1112
        %v1114 = vmul.f32 1.0, %v1113
        %v1115 = vadd.f32 %v1105, %v394
        %1117 = vrot.lane.b32.xlu0 %v1115, 64
        %v1118 = vpop.permute.xlu0 %1117
        %v1120 = vmul.f32 %v1114, %v1118
        %1122 = vrot.lane.b32.xlu0 %v1120, 64
        %v1123 = vpop.permute.xlu0 %1122
        %v1125 = vadd.f32 %v1033, %v1123
        %v1126 = vtanh.pop %v1125
        %1128 = vrot.lane.b32.xlu0 %v1126, 64
        %v1129 = vpop.permute.xlu0 %1128
        %v1131 = vsub.f32 %v1034, %v1129
        %1133 = vrot.lane.b32.xlu0 %v1131, 32
        %v1134 = vpop.permute.xlu0 %1133
        %v1136 = vmul.f32 %v1114, %v1134
        %1138 = vrot.lane.b32.xlu0 %v1136, 32
        %v1139 = vpop.permute.xlu0 %1138
        %v1141 = vadd.f32 %v1126, %v1139
        %1143 = vrot.lane.b32.xlu0 %v1141, 64
        %v1144 = vpop.permute.xlu0 %1143
        %1146 = vst.msk [vmem:[#allocation2] sm:$0x3] %vm427, %v1144
        %s1147 = scalar_lea.vmem %s277, %s1031 [#allocation8]
        %1148 = vst.msk [vmem:[%s1147] sm:$0x3] %vm427, %v1144
        %s1149 = smul.u32 %s27, 4294967289
        %s1150 = sadd.s32 %s1149, 7
        %s1151 = smul.u32 %s1150, 2
        %s1152 = scalar_lea.vmem %s238, %s1151 [#allocation3]
        %v1153 = vld [vmem:[%s1152] sm:$0x3]
        %v1154 = vld [vmem:[#allocation2] sm:$0x3]
        %v1156 = vsel %vm307, %v1154, 0
        %1158 = vmatprep.subr.mxu0 0.0
        %1159 = vmatpush1.msra.mxu0 %v297
        %1160 = vmatprep.subr.mxu0 0.0
        %1161 = vmatpush1.msra.mxu0 %v298
        %1162 = vmatprep.subr.mxu0 0.0
        %1163 = vmatpush1.msra.mxu0 %v299
        %1164 = vmatprep.subr.mxu0 0.0
        %1165 = vmatpush1.msra.mxu0 %v300
        %1166 = vmatprep.subr.mxu0 0.0
        %1167 = vmatpush1.msra.mxu0 0.0
        %1168 = vmatprep.subr.mxu0 0.0
        %1169 = vmatpush1.msra.mxu0 0.0
        %1170 = vmatprep.subr.mxu0 0.0
        %1171 = vmatpush1.msra.mxu0 0.0
        %1172 = vmatprep.subr.mxu0 0.0
        %1173 = vmatpush1.msra.mxu0 0.0
        %1174 = vmatprep.subr.mxu0 0.0
        %1175 = vmatpush1.msra.mxu0 0.0
        %1176 = vmatprep.subr.mxu0 0.0
        %1177 = vmatpush1.msra.mxu0 0.0
        %1178 = vmatprep.subr.mxu0 0.0
        %1179 = vmatpush1.msra.mxu0 0.0
        %1180 = vmatprep.subr.mxu0 0.0
        %1181 = vmatpush1.msra.mxu0 0.0
        %1182 = vmatprep.subr.mxu0 0.0
        %1183 = vmatpush1.msra.mxu0 0.0
        %1184 = vmatprep.subr.mxu0 0.0
        %1185 = vmatpush1.msra.mxu0 0.0
        %1186 = vmatprep.subr.mxu0 0.0
        %1187 = vmatpush1.msra.mxu0 0.0
        %1188 = vmatprep.subr.mxu0 0.0
        %1189 = vmatpush1.msra.mxu0 0.0
        %1190 = vmatprep.subr.mxu0 0.0
        %1191 = vmatpush1.msra.mxu0 0.0
        %1192 = vmatprep.subr.mxu0 0.0
        %1193 = vmatpush1.msra.mxu0 0.0
        %1194 = vmatprep.subr.mxu0 0.0
        %1195 = vmatpush1.msra.mxu0 0.0
        %1196 = vmatprep.subr.mxu0 0.0
        %1197 = vmatpush1.msra.mxu0 0.0
        %1198 = vmatprep.subr.mxu0 0.0
        %1199 = vmatpush1.msra.mxu0 0.0
        %1200 = vmatprep.subr.mxu0 0.0
        %1201 = vmatpush1.msra.mxu0 0.0
        %1202 = vmatprep.subr.mxu0 0.0
        %1203 = vmatpush1.msra.mxu0 0.0
        %1204 = vmatprep.subr.mxu0 0.0
        %1205 = vmatpush1.msra.mxu0 0.0
        %1206 = vmatprep.subr.mxu0 0.0
        %1207 = vmatpush1.msra.mxu0 0.0
        %1208 = vmatprep.subr.mxu0 0.0
        %1209 = vmatpush1.msra.mxu0 0.0
        %1210 = vmatprep.subr.mxu0 0.0
        %1211 = vmatpush1.msra.mxu0 0.0
        %1212 = vmatprep.subr.mxu0 0.0
        %1213 = vmatpush1.msra.mxu0 0.0
        %1214 = vmatprep.subr.mxu0 0.0
        %1215 = vmatpush1.msra.mxu0 0.0
        %1216 = vmatprep.subr.mxu0 0.0
        %1217 = vmatpush1.msra.mxu0 0.0
        %1218 = vmatprep.subr.mxu0 0.0
        %1219 = vmatpush1.msra.mxu0 0.0
        %1220 = vmatprep.subr.mxu0 0.0
        %1221 = vmatpush1.msra.mxu0 0.0
        %1222 = vmatprep.mubr.f32.mxu0 0.0
        %1223 = vmatmul.mubr.f32.gmra.mrb[0].mxu0 %v1156
        %v1224 = vpop.f32.mrb[0].mxu0
        %v1225 = vadd.f32 0.0, %v1224
        %v1226 = vpop.f32.mrb[0].mxu0
        %1227 = vdwg.mxu0
        %v1228 = vadd.f32 %v1153, %v1225
        %v1229 = vxor.u32 %v1228, 2147483648
        %v1230 = vmul.f32 %v1229, 1.442695
        %v1231 = vpow.pop %v1230
        %v1232 = vadd.f32 %v1231, 1.0
        %v1233 = vrcp.pop %v1232
        %v1234 = vmul.f32 1.0, %v1233
        %v1235 = vadd.f32 %v1225, %v394
        %1237 = vrot.lane.b32.xlu0 %v1235, 64
        %v1238 = vpop.permute.xlu0 %1237
        %v1240 = vmul.f32 %v1234, %v1238
        %1242 = vrot.lane.b32.xlu0 %v1240, 64
        %v1243 = vpop.permute.xlu0 %1242
        %v1245 = vadd.f32 %v1153, %v1243
        %v1246 = vtanh.pop %v1245
        %1248 = vrot.lane.b32.xlu0 %v1246, 64
        %v1249 = vpop.permute.xlu0 %1248
        %v1251 = vsub.f32 %v1154, %v1249
        %1253 = vrot.lane.b32.xlu0 %v1251, 32
        %v1254 = vpop.permute.xlu0 %1253
        %v1256 = vmul.f32 %v1234, %v1254
        %1258 = vrot.lane.b32.xlu0 %v1256, 32
        %v1259 = vpop.permute.xlu0 %1258
        %v1261 = vadd.f32 %v1246, %v1259
        %1263 = vrot.lane.b32.xlu0 %v1261, 64
        %v1264 = vpop.permute.xlu0 %1263
        %1266 = vst.msk [vmem:[#allocation2] sm:$0x3] %vm427, %v1264
        %s1267 = scalar_lea.vmem %s277, %s1151 [#allocation8]
        %1268 = vst.msk [vmem:[%s1267] sm:$0x3] %vm427, %v1264
        %s1269 = sand.u32 %s141, 1
        %s1270 = scalar_lea.sflag [#allocation5], %s1269
        %s1271 = sand.u32 %s141, 1
        %s1272 = smul.addr %s1271, 16
        %s1273 = scalar_lea.vmem [#allocation8], %s1272
        // Predicated region
        $region45: #{tpu_custom_call.1} parent=31 // pred_check
          %p1274 = pneg %p151
        $region46: #{tpu_custom_call.1} parent=31 // pred_check_branch
          %1276 = sbr.rel (%p1274) target = $region48
        $region47: #{tpu_custom_call.1} parent=31 // pred_region
          %s1277 = smul.u32 %s28, 2
          %s1278 = ssub.s32 0, %s1277
          %s1279 = smul.u32 %s27, %s1278
          %s1280 = sadd.s32 %s28, %s1279
          %s1281 = smul.u32 8, %s1280
          %s1283 = ssub.s32 256, 256
          %1284 = vsyncadd %s1270, %s1283
          %s1285 = smul.addr %s27, 8
          %s1286 = sadd.s32 %s1281, %s1285
          %s1287 = smul.addr %s1286, 32
          %s1288 = scalar_lea.hbm %s3, %s1287
          %s1289 = sshll.u32 %s1273, 4
          %s1290 = int_to_ptr.vmem [resolvable:$true] %s1289
          %1295 = dma.vmem_to_hbm [thread:$0]  %s1290, 256, %s1288, %s1270, 32, 32, 2
        $region48: #{tpu_custom_call.1} parent=31 // pred_fallthru
          _
      $region32: #{tpu_custom_call.1} parent=5 // pred_fallthru
        _
      %p1296 = scmp.le.s32.totalorder 2, %s18
      // Predicated region
      $region49: #{tpu_custom_call.1} parent=5 // pred_check
        %p1297 = pneg %p1296
      $region50: #{tpu_custom_call.1} parent=5 // pred_check_branch
        %1299 = sbr.rel (%p1297) target = $region52
      $region51: #{tpu_custom_call.1} parent=5 // pred_region
        %s1300 = ssub.s32 %s18, 2
        // Predicated region
        $region53: #{tpu_custom_call.1} parent=51 // pred_check
          %p1301 = pneg %p157
        $region54: #{tpu_custom_call.1} parent=51 // pred_check_branch
          %1303 = sbr.rel (%p1301) target = $region56
        $region55: #{tpu_custom_call.1} parent=51 // pred_region
          %s1304 = sand.u32 %s142, 1
          %s1305 = scalar_lea.sflag [#allocation5], %s1304
          %s1306 = sand.u32 %s142, 1
          %s1307 = smul.addr %s1306, 16
          %s1308 = scalar_lea.vmem [#allocation8], %s1307
          %1309 = dma.done %s1305, 256
        $region56: #{tpu_custom_call.1} parent=51 // pred_fallthru
          _
      $region52: #{tpu_custom_call.1} parent=5 // pred_fallthru
        _
    $region6: #{tpu_custom_call.1} parent=1 // loop_footer
      %s22 = sadd.s32 1, %s18
    $region7: #{tpu_custom_call.1} parent=1 // loop_footer_branch
      %17 = sbr.rel target = $region3
    $region8: #{tpu_custom_call.1} parent=1 // loop_exit
      _
    %1310 = vsyncpa [#allocation4], 1
    %s1311 = scalar_lea.sflag [#allocation4], 1
    %1312 = vsyncpa %s1311, 1
    %1313 = vsyncpa [#allocation7], 1
    %s1314 = scalar_lea.sflag [#allocation7], 1
    %1315 = vsyncpa %s1314, 1
    %1316 = vsyncpa [#allocation5], 1
    %s1317 = scalar_lea.sflag [#allocation5], 1
    %1318 = vsyncpa %s1317, 1

</llo_original>
